<compile_context>
chip_gen: v5e
topology: v5e:2x2
jax: 0.10.0
libtpu: 0.0.40
codegen_flags: <defaults>
</compile_context>

<pallas_src>
import functools

import jax
import jax.numpy as jnp
import numpy as np
from jax.experimental import pallas as pl
from jax.experimental.pallas import tpu as pltpu

EMBED_DIM = 128
KERNEL_NUM = 100            # conv output channels in the PyTorch module
CLASS_NUM = 17
KS = (3, 4, 5)              # conv kernel sizes
KMAX = max(KS)
C_PAD = 128                 # per-conv channels padded to one full lane width
C3 = len(KS) * C_PAD        # 384 fused conv output channels
N_PAD = 128                 # logits padded 17 -> 128 lanes (lane-dense output store)


def _round_up(x, m):
    return ((x + m - 1) // m) * m


def _vmem_capacity_bytes():
    """Physical per-core VMEM; falls back to the smallest (v7x) if unavailable."""
    try:
        return int(pltpu.get_tpu_info().vmem_capacity_bytes)
    except Exception:
        return 64 * 1024 * 1024


def _choose_block_b(B, Lp, n_win, t_chunk, vmem_limit):
    """Largest batch tile that fits the VMEM budget (incl. in-kernel intermediates)."""
    # Resident weights / bias / mask (double-buffered by the pipeline).
    fixed = 2 * (KMAX * EMBED_DIM * C3 * 2 + C3 * 4 + n_win * C3 * 4
                 + C3 * N_PAD * 4 + N_PAD * 4)
    # Per-batch-row bytes: activation tile (x2 buffers), output tile (x2 buffers),
    # sliced time chunk, bf16 im2col slab, f32 conv-output chunk, pooled/feat temps.
    per_b = (2 * Lp * EMBED_DIM * 2
             + 2 * N_PAD * 4
             + (t_chunk + 16) * EMBED_DIM * 2
             + t_chunk * KMAX * EMBED_DIM * 2
             + t_chunk * C3 * 4
             + 4 * C3 * 4)
    budget = int(vmem_limit * 0.8) - fixed        # 20% headroom for compiler scratch
    bb = max(8, (budget // per_b) // 8 * 8)
    bb = min(bb, 256)                             # M = bb * t_chunk is already >> MXU fill
    # Keep the grid length >= 2 when the batch allows (v7x megacore sharding).
    bb = min(bb, max(8, _round_up((B + 1) // 2, 8)))
    return bb


def cnn_text_kernel(x_ref, w_ref, b_ref, mask_ref, wfc_ref, bfc_ref, out_ref, *,
                    t_chunk, n_chunks):
    """One batch tile of the TextCNN forward.

    x_ref    : (Bt, Lp, D)    bf16  zero-padded embedded tokens (Lp = n_win + 16)
    w_ref    : (KMAX*D, C3)   bf16  fused conv weights (taps / channels zero-padded)
    b_ref    : (1, C3)        f32   fused conv bias
    mask_ref : (n_win, C3)    f32   additive validity mask (0 valid / -1e30 invalid)
    wfc_ref  : (C3, N_PAD)    f32   fc1 weight (padded rows/cols are zero)
    bfc_ref  : (1, N_PAD)     f32   fc1 bias (padded cols zero)
    out_ref  : (Bt, N_PAD)    f32   padded logits
    """
    bt = x_ref.shape[0]
    d = x_ref.shape[2]
    c3 = w_ref.shape[1]
    w = w_ref[...]

    def chunk_max(xc, mc):
        # In-kernel im2col over the KMAX taps -> ONE (Bt*Tc, KMAX*D)@(KMAX*D, C3)
        # MXU matmul per chunk (K=640 keeps v6e/v7x's 256-deep contraction full).
        win = jnp.concatenate([xc[:, j:j + t_chunk, :] for j in range(KMAX)], axis=-1)
        y = jnp.dot(win.reshape(bt * t_chunk, KMAX * d), w,
                    preferred_element_type=jnp.float32)
        # Additive mask (f32, so the -1e30 sentinel does not saturate) then max-pool.
        y = y.reshape(bt, t_chunk, c3) + mc[None, :, :]
        return jnp.max(y, axis=1)                          # (Bt, C3)

    if n_chunks == 1:
        pooled = chunk_max(x_ref[...], mask_ref[...])
    else:
        def body(tc, pooled):
            t0 = pl.multiple_of(tc * t_chunk, t_chunk)
            return jnp.maximum(
                pooled,
                chunk_max(x_ref[:, pl.ds(t0, t_chunk + 16), :],
                          mask_ref[pl.ds(t0, t_chunk), :]))
        pooled = jax.lax.fori_loop(0, n_chunks, body,
                                   jnp.full((bt, c3), -1e30, jnp.float32),
                                   unroll=n_chunks <= 8)

    # Bias + ReLU after the pool: max(relu(x + b)) == relu(max(x) + b).
    feat = jnp.maximum(pooled + b_ref[...], 0.0)
    # Dropout(0.5) is identity in eval mode.
    logits = jnp.dot(feat, wfc_ref[...],
                     preferred_element_type=jnp.float32) + bfc_ref[...]
    out_ref[...] = logits.astype(out_ref.dtype)


def _fuse_params(params):
    """Zero-pad channels 100->128 and taps to KMAX; fuse convs; pad fc1 to 128 lanes."""
    w_big = jnp.zeros((KMAX, EMBED_DIM, C3), jnp.float32)
    b_big = jnp.zeros((1, C3), jnp.float32)
    wfc_p = jnp.zeros((C3, N_PAD), jnp.float32)
    bfc_p = jnp.zeros((1, N_PAD), jnp.float32)
    for bi, K in enumerate(KS):
        lo = bi * C_PAD
        w_big = w_big.at[:K, :, lo:lo + KERNEL_NUM].set(params[f'w{K}'])
        b_big = b_big.at[:, lo:lo + KERNEL_NUM].set(params[f'b{K}'])
        wfc_p = wfc_p.at[lo:lo + KERNEL_NUM, :CLASS_NUM].set(
            params['wfc'][bi * KERNEL_NUM:(bi + 1) * KERNEL_NUM, :])
    bfc_p = bfc_p.at[:, :CLASS_NUM].set(params['bfc'])
    w_big = w_big.reshape(KMAX * EMBED_DIM, C3).astype(jnp.bfloat16)   # (640, 384)
    return w_big, b_big, wfc_p, bfc_p


def _build_mask(seq_len, n_win):
    """Additive (n_win, C3) mask: 0 where the conv window is valid, -1e30 otherwise.

    Built generically per kernel size (no assumption that KS is consecutive); padded
    channels (100..127 of each 128-block) stay at -1e30 and are zeroed by the ReLU.
    """
    mask = np.full((n_win, C3), -1e30, np.float32)
    for bi, K in enumerate(KS):
        n_valid = max(0, min(n_win, seq_len - K + 1))
        lo = bi * C_PAD
        mask[:n_valid, lo:lo + KERNEL_NUM] = 0.0
    return jnp.asarray(mask)


def cnn_text_forward(x_tokens, params, *, block_b=None, t_chunk_max=128):
    """x_tokens: int32 (B, L) token ids.  Returns (B, CLASS_NUM) f32 logits."""
    B, L = x_tokens.shape
    D = EMBED_DIM
    assert L >= KMAX

    n_win0 = _round_up(L, 16)                 # window positions, 16-aligned (bf16 packing)
    t_chunk = min(t_chunk_max, n_win0)        # time chunk processed per MXU matmul
    n_win = _round_up(n_win0, t_chunk)
    n_chunks = n_win // t_chunk
    Lp = n_win + 16                           # padded seq len (>= n_win + KMAX - 1), 16-aligned

    vmem_limit = int(_vmem_capacity_bytes() * 0.75)   # ~48 MiB v7x, ~96 MiB v5e/v6e
    if block_b is None:
        block_b = _choose_block_b(B, Lp, n_win, t_chunk, vmem_limit)
    block_b = max(8, (min(block_b, _round_up(B, 8)) // 8) * 8)
    Bp = _round_up(B, block_b)

    # Embedding gather in bf16 (cast the table once), then a single pad.
    x_emb = jnp.take(params['embed'].astype(jnp.bfloat16), x_tokens, axis=0)  # (B,L,D)
    x_pad = jnp.pad(x_emb, ((0, Bp - B), (0, Lp - L), (0, 0)))

    w_big, b_big, wfc_p, bfc_p = _fuse_params(params)
    mask = _build_mask(L, n_win)

    flops = 2 * Bp * n_win * (KMAX * D) * C3 + 2 * Bp * C3 * N_PAD
    bytes_accessed = (x_pad.size * 2 + w_big.size * 2 + b_big.size * 4 +
                      mask.size * 4 + wfc_p.size * 4 + bfc_p.size * 4 +
                      Bp * N_PAD * 4)

    kernel = functools.partial(cnn_text_kernel, t_chunk=t_chunk, n_chunks=n_chunks)
    out = pl.pallas_call(
        kernel,
        out_shape=jax.ShapeDtypeStruct((Bp, N_PAD), jnp.float32),
        grid=(Bp // block_b,),
        in_specs=[
            pl.BlockSpec((block_b, Lp, D), lambda b: (b, 0, 0)),     # activations: tiled
            pl.BlockSpec((KMAX * D, C3), lambda b: (0, 0)),          # fused conv W: resident
            pl.BlockSpec((1, C3), lambda b: (0, 0)),                 # fused conv bias
            pl.BlockSpec((n_win, C3), lambda b: (0, 0)),             # validity mask
            pl.BlockSpec((C3, N_PAD), lambda b: (0, 0)),             # fc1 weight
            pl.BlockSpec((1, N_PAD), lambda b: (0, 0)),              # fc1 bias
        ],
        out_specs=pl.BlockSpec((block_b, N_PAD), lambda b: (b, 0)),  # lane-dense output
        compiler_params=pltpu.CompilerParams(
            dimension_semantics=("parallel",),        # megacore sharding on v7x
            vmem_limit_bytes=vmem_limit),             # derived, not hard-coded
        cost_estimate=pl.CostEstimate(flops=flops, transcendentals=0,
                                      bytes_accessed=bytes_accessed),
    )(x_pad, w_big, b_big, mask, wfc_p, bfc_p)
    return out[:B, :CLASS_NUM]


def init_params(key, embed_num):
    ks = jax.random.split(key, 10)
    params = {
        'embed': jax.random.normal(ks[0], (embed_num, EMBED_DIM), jnp.float32) * 0.1,
        'wfc': jax.random.normal(ks[1], (len(KS) * KERNEL_NUM, CLASS_NUM),
                                 jnp.float32) * 0.05,
        'bfc': jax.random.normal(ks[2], (1, CLASS_NUM), jnp.float32) * 0.01,
    }
    for i, K in enumerate(KS):
        params[f'w{K}'] = jax.random.normal(ks[3 + 2 * i], (K, EMBED_DIM, KERNEL_NUM),
                                            jnp.float32) * 0.05
        params[f'b{K}'] = jax.random.normal(ks[4 + 2 * i], (1, KERNEL_NUM),
                                            jnp.float32) * 0.01
    return params


def reference_forward(x_tokens, params):
    """Pure-JAX f32 reference mirroring the PyTorch forward (eval mode)."""
    x = jnp.take(params['embed'], x_tokens, axis=0)      # (B, L, D)
    B, L, D = x.shape
    feats = []
    for K in KS:
        Lk = L - K + 1
        w = params[f'w{K}']                               # (K, D, C)
        acc = jnp.zeros((B, Lk, KERNEL_NUM), jnp.float32)
        for j in range(K):
            acc = acc + jnp.einsum('bld,dc->blc', x[:, j:j + Lk, :], w[j])
        acc = jax.nn.relu(acc + params[f'b{K}'][None, :, :])
        feats.append(jnp.max(acc, axis=1))
    feat = jnp.concatenate(feats, axis=-1)
    return feat @ params['wfc'] + params['bfc']


if __name__ == "__main__":
    key = jax.random.PRNGKey(0)
    k_tok, k_par = jax.random.split(key)

    embed_num = 50      # small synthetic vocabulary
    B, L = 16, 16       # batch=16 (grid of 2 tiles), sequence length=16

    x_tokens = jax.random.randint(k_tok, (B, L), 0, embed_num, dtype=jnp.int32)
    params = init_params(k_par, embed_num)

    logits = jax.block_until_ready(cnn_text_forward(x_tokens, params))
    assert logits.shape == (B, CLASS_NUM)

    ref = reference_forward(x_tokens, params)
    # bf16 matmul inputs with f32 accumulation -> loose-but-meaningful tolerance.
    np.testing.assert_allclose(np.asarray(logits), np.asarray(ref),
                               rtol=5e-2, atol=1e-2)

    print("KERNEL_OK")
</pallas_src>

<mosaic_0001>
module attributes {stable_mosaic.version = 11 : i64} {
  func.func @cnn_text_kernel(%arg0: i32, %arg1: memref<8x32x128xbf16, #tpu.memory_space<vmem>>, %arg2: memref<640x384xbf16, #tpu.memory_space<vmem>>, %arg3: memref<1x384xf32, #tpu.memory_space<vmem>>, %arg4: memref<16x384xf32, #tpu.memory_space<vmem>>, %arg5: memref<384x128xf32, #tpu.memory_space<vmem>>, %arg6: memref<1x128xf32, #tpu.memory_space<vmem>>, %arg7: memref<8x128xf32, #tpu.memory_space<vmem>>) attributes {dimension_semantics = [#tpu.dimension_semantics<parallel>], iteration_bounds = array<i64: 2>, scalar_prefetch = 0 : i64, scratch_operands = 0 : i64, tpu.core_type = #tpu.core_type<tc>, window_params = [{transform_indices = @transform_0, window_bounds = array<i64: 8, 32, 128>}, {pipeline_mode = #tpu.pipeline_mode<synchronous>, transform_indices = @transform_1, window_bounds = array<i64: 640, 384>}, {pipeline_mode = #tpu.pipeline_mode<synchronous>, transform_indices = @transform_2, window_bounds = array<i64: 1, 384>}, {pipeline_mode = #tpu.pipeline_mode<synchronous>, transform_indices = @transform_3, window_bounds = array<i64: 16, 384>}, {pipeline_mode = #tpu.pipeline_mode<synchronous>, transform_indices = @transform_4, window_bounds = array<i64: 384, 128>}, {pipeline_mode = #tpu.pipeline_mode<synchronous>, transform_indices = @transform_5, window_bounds = array<i64: 1, 128>}, {transform_indices = @transform_6, window_bounds = array<i64: 8, 128>}]} {
    %c0 = arith.constant 0 : index
    %c0_0 = arith.constant 0 : index
    %0 = vector.load %arg2[%c0, %c0_0] : memref<640x384xbf16, #tpu.memory_space<vmem>>, vector<640x384xbf16>
    %c0_1 = arith.constant 0 : index
    %c0_2 = arith.constant 0 : index
    %c0_3 = arith.constant 0 : index
    %1 = vector.load %arg1[%c0_1, %c0_2, %c0_3] : memref<8x32x128xbf16, #tpu.memory_space<vmem>>, vector<8x32x128xbf16>
    %c0_4 = arith.constant 0 : index
    %c0_5 = arith.constant 0 : index
    %2 = vector.load %arg4[%c0_4, %c0_5] : memref<16x384xf32, #tpu.memory_space<vmem>>, vector<16x384xf32>
    %3 = vector.extract_strided_slice %1 {offsets = [0, 0, 0], sizes = [8, 16, 128], strides = [1, 1, 1]} : vector<8x32x128xbf16> to vector<8x16x128xbf16>
    %4 = vector.extract_strided_slice %1 {offsets = [0, 1, 0], sizes = [8, 16, 128], strides = [1, 1, 1]} : vector<8x32x128xbf16> to vector<8x16x128xbf16>
    %5 = vector.extract_strided_slice %1 {offsets = [0, 2, 0], sizes = [8, 16, 128], strides = [1, 1, 1]} : vector<8x32x128xbf16> to vector<8x16x128xbf16>
    %6 = vector.extract_strided_slice %1 {offsets = [0, 3, 0], sizes = [8, 16, 128], strides = [1, 1, 1]} : vector<8x32x128xbf16> to vector<8x16x128xbf16>
    %7 = vector.extract_strided_slice %1 {offsets = [0, 4, 0], sizes = [8, 16, 128], strides = [1, 1, 1]} : vector<8x32x128xbf16> to vector<8x16x128xbf16>
    %8 = tpu.concatenate %3, %4, %5, %6, %7 in 2 : vector<8x16x128xbf16>, vector<8x16x128xbf16>, vector<8x16x128xbf16>, vector<8x16x128xbf16>, vector<8x16x128xbf16> -> vector<8x16x640xbf16>
    %9 = vector.shape_cast %8 : vector<8x16x640xbf16> to vector<128x640xbf16>
    %cst = arith.constant dense<0.000000e+00> : vector<128x384xf32>
    %10 = tpu.matmul %9, %0, %cst {dimension_numbers = #tpu.dot_dimension_numbers<[1], [0], [0], [1], [0, 0, 1, 1], [], []>} : vector<128x640xbf16>, vector<640x384xbf16>, vector<128x384xf32> -> vector<128x384xf32>
    %11 = vector.shape_cast %10 : vector<128x384xf32> to vector<8x16x384xf32>
    %12 = vector.shape_cast %2 : vector<16x384xf32> to vector<1x16x384xf32>
    %13 = vector.broadcast %12 : vector<1x16x384xf32> to vector<8x16x384xf32>
    %14 = arith.addf %11, %13 : vector<8x16x384xf32>
    %cst_6 = arith.constant dense<0xFF800000> : vector<8x384xf32>
    %15 = vector.multi_reduction <maximumf>, %14, %cst_6 [1] : vector<8x16x384xf32> to vector<8x384xf32>
    %c0_7 = arith.constant 0 : index
    %c0_8 = arith.constant 0 : index
    %16 = vector.load %arg3[%c0_7, %c0_8] : memref<1x384xf32, #tpu.memory_space<vmem>>, vector<1x384xf32>
    %17 = vector.broadcast %16 : vector<1x384xf32> to vector<8x384xf32>
    %18 = arith.addf %15, %17 : vector<8x384xf32>
    %cst_9 = arith.constant 0.000000e+00 : f32
    %19 = vector.broadcast %cst_9 : f32 to vector<8x384xf32>
    %20 = arith.maximumf %18, %19 : vector<8x384xf32>
    %c0_10 = arith.constant 0 : index
    %c0_11 = arith.constant 0 : index
    %21 = vector.load %arg5[%c0_10, %c0_11] : memref<384x128xf32, #tpu.memory_space<vmem>>, vector<384x128xf32>
    %cst_12 = arith.constant dense<0.000000e+00> : vector<8x128xf32>
    %22 = tpu.matmul %20, %21, %cst_12 {dimension_numbers = #tpu.dot_dimension_numbers<[1], [0], [0], [1], [0, 0, 1, 1], [], []>} : vector<8x384xf32>, vector<384x128xf32>, vector<8x128xf32> -> vector<8x128xf32>
    %c0_13 = arith.constant 0 : index
    %c0_14 = arith.constant 0 : index
    %23 = vector.load %arg6[%c0_13, %c0_14] : memref<1x128xf32, #tpu.memory_space<vmem>>, vector<1x128xf32>
    %24 = vector.broadcast %23 : vector<1x128xf32> to vector<8x128xf32>
    %25 = arith.addf %22, %24 : vector<8x128xf32>
    %c0_15 = arith.constant 0 : index
    %c0_16 = arith.constant 0 : index
    %26 = vector.load %arg7[%c0_15, %c0_16] : memref<8x128xf32, #tpu.memory_space<vmem>>, vector<8x128xf32>
    tpu.vector_store %arg7[%c0_15, %c0_16], %25 {strides = array<i32>} : memref<8x128xf32, #tpu.memory_space<vmem>>, vector<8x128xf32>,
    return
  }
  func.func @transform_0(%arg0: i32) -> (i32, i32, i32) {
    %c0_i32 = arith.constant 0 : i32
    %c0_i32_0 = arith.constant 0 : i32
    %c0_i32_1 = arith.constant 0 : i32
    return %arg0, %c0_i32, %c0_i32_0 : i32, i32, i32
  }
  func.func @transform_1(%arg0: i32) -> (i32, i32) {
    %c0_i32 = arith.constant 0 : i32
    %c0_i32_0 = arith.constant 0 : i32
    %c0_i32_1 = arith.constant 0 : i32
    return %c0_i32, %c0_i32_0 : i32, i32
  }
  func.func @transform_2(%arg0: i32) -> (i32, i32) {
    %c0_i32 = arith.constant 0 : i32
    %c0_i32_0 = arith.constant 0 : i32
    %c0_i32_1 = arith.constant 0 : i32
    return %c0_i32, %c0_i32_0 : i32, i32
  }
  func.func @transform_3(%arg0: i32) -> (i32, i32) {
    %c0_i32 = arith.constant 0 : i32
    %c0_i32_0 = arith.constant 0 : i32
    %c0_i32_1 = arith.constant 0 : i32
    return %c0_i32, %c0_i32_0 : i32, i32
  }
  func.func @transform_4(%arg0: i32) -> (i32, i32) {
    %c0_i32 = arith.constant 0 : i32
    %c0_i32_0 = arith.constant 0 : i32
    %c0_i32_1 = arith.constant 0 : i32
    return %c0_i32, %c0_i32_0 : i32, i32
  }
  func.func @transform_5(%arg0: i32) -> (i32, i32) {
    %c0_i32 = arith.constant 0 : i32
    %c0_i32_0 = arith.constant 0 : i32
    %c0_i32_1 = arith.constant 0 : i32
    return %c0_i32, %c0_i32_0 : i32, i32
  }
  func.func @transform_6(%arg0: i32) -> (i32, i32) {
    %c0_i32 = arith.constant 0 : i32
    %c0_i32_0 = arith.constant 0 : i32
    return %arg0, %c0_i32 : i32, i32
  }
}

</mosaic_0001>

<llo_original>
// kernel: tpu_custom_call.1
$region0: #{tpu_custom_call.1}
  #allocation0 [shape = 'u32[]', space=smem, size = 0x4, offset = 0x4, fixed_abs, tag = 'smem constant byte address 0x4 - core index']
  #allocation1 [shape = 'u32[72,128]{1,0:T(1,128)}', space=vmem, size = 0x9000, scoped, tag = 'internal scratch']
  %s0 = inlined_call_operand.hbm [shape: bf16[16,32,128], index: 0, kind: input, shape index: {}]
  %s1 = inlined_call_operand.hbm [shape: bf16[640,384], index: 1, kind: input, shape index: {}]
  %s2 = inlined_call_operand.hbm [shape: f32[1,384], index: 2, kind: input, shape index: {}]
  %s3 = inlined_call_operand.hbm [shape: f32[16,384], index: 3, kind: input, shape index: {}]
  %s4 = inlined_call_operand.hbm [shape: f32[384,128], index: 4, kind: input, shape index: {}]
  %s5 = inlined_call_operand.vmem [shape: f32[1,128], index: 5, kind: input, shape index: {}]
  %s6 = inlined_call_operand.hbm [shape: f32[16,128], index: 6, kind: output, shape index: {}]
  %s7 = sld [smem:[#allocation0]]
  $region77: #{tpu_custom_call.1} parent=0
    _
  %s9 = ssub.s32 1, %s7
  %s10 = scalar_select 0, %s9, %s7
  $region1: #{tpu_custom_call.1} parent=0
    #allocation2 [shape = 'u8[131072]{0}', space=vmem, size = 0x20000, scoped, tag = 'input window, operand 0']
    #allocation3 [shape = 's32[2]{0}', space=sflag, size = 0x8, scoped, tag = 'scoped memory for tpu_custom_call.1']
    #allocation4 [shape = 's32[2]{0}', space=sflag, size = 0x8, scoped, tag = 'scoped memory for tpu_custom_call.1']
    #allocation5 [shape = 'u8[491520]{0}', space=vmem, size = 0x78000, scoped, tag = 'input window, operand 1, single buffered']
    #allocation6 [shape = 's32[1]{0}', space=sflag, size = 0x4, scoped, tag = 'scoped memory for tpu_custom_call.1']
    #allocation7 [shape = 'u8[1536]{0}', space=vmem, size = 0x800, scoped, tag = 'input window, operand 2, single buffered']
    #allocation8 [shape = 'u8[24576]{0}', space=vmem, size = 0x6000, scoped, tag = 'input window, operand 3, single buffered']
    #allocation9 [shape = 's32[1]{0}', space=sflag, size = 0x4, scoped, tag = 'scoped memory for tpu_custom_call.1']
    #allocation10 [shape = 'u8[196608]{0}', space=vmem, size = 0x30000, scoped, tag = 'input window, operand 4, single buffered']
    #allocation11 [shape = 'u8[8192]{0}', space=vmem, size = 0x2000, scoped, tag = 'output window, operand 0']
    %11 = vsyncpa [#allocation3], 0
    %s12 = scalar_lea.sflag [#allocation3], 1
    %13 = vsyncpa %s12, 0
    %14 = vsyncpa [#allocation6], 0
    %15 = vsyncpa [#allocation9], 0
    %16 = vsyncpa [#allocation4], 0
    %s17 = scalar_lea.sflag [#allocation4], 1
    %18 = vsyncpa %s17, 0
    loop: start=0, step=1, limit=4
    $region2: #{tpu_custom_call.1} parent=1 // loop_pre_header
      _
    $region3: #{tpu_custom_call.1} parent=1 // loop_header
      %s20 = sphi 0, %s24
      %p21 = scmp.ge.s32.totalorder %s20, 4
      %s30 = sphi 0, %s32
      %s33 = sphi 0, %s30
      %s34 = sphi 0, %s33
      %s50 = sphi 0, %s34
      %s54 = sphi 0, %s54
      %s56 = sphi 0, %s54
      %s57 = sphi 0, %s56
      %s71 = sphi 0, %s57
      %s75 = sphi 0, %s75
      %s77 = sphi 0, %s75
      %s78 = sphi 0, %s77
      %s92 = sphi 0, %s78
      %s96 = sphi 0, %s96
      %s98 = sphi 0, %s96
      %s99 = sphi 0, %s98
      %s113 = sphi 0, %s99
      %s117 = sphi 0, %s117
      %s119 = sphi 0, %s117
      %s120 = sphi 0, %s119
      %s134 = sphi 0, %s120
      %s138 = sphi 0, %s138
      %s140 = sphi 0, %s138
      %s141 = sphi 0, %s140
      %s155 = sphi 0, %s141
      %s161 = sphi 0, %s163
      %s164 = sphi 0, %s161
      %s165 = sphi 0, %s164
      %s181 = sphi 0, %s165
    $region4: #{tpu_custom_call.1} parent=1 // loop_header_branch
      %23 = sbr.rel (%p21) target = $region8
    $region5: #{tpu_custom_call.1} parent=1 // loop_body
      %s25 = ssub.s32 %s20, 1
      %s26 = ssub.s32 %s20, 2
      %s27 = sadd.s32 %s20, 1
      %s28 = ssub.s32 %s20, %s27
      %p29 = scmp.eq.s32.totalorder %s28, 0
      %s31 = sadd.s32 %s30, 1
      %s32 = scalar_select %p29, %s30, %s31
      %p35 = pneg %p29
      %p36 = scmp.eq.s32.totalorder %s20, 1
      %p37 = por %p35, %p36
      %p38 = scmp.ne.s32.totalorder %s30, %s33
      %p39 = scmp.eq.s32.totalorder %s20, 0
      %p40 = por %p38, %p39
      %p41 = scmp.ne.s32.totalorder %s30, %s33
      %p42 = scmp.eq.s32.totalorder %s25, 1
      %p43 = por %p41, %p42
      %p44 = scmp.ne.s32.totalorder %s33, %s34
      %p45 = scmp.eq.s32.totalorder %s25, 0
      %p46 = por %p44, %p45
      %p47 = scmp.ne.s32.totalorder %s33, %s34
      %p48 = scmp.eq.s32.totalorder %s26, 1
      %p49 = por %p47, %p48
      %p51 = scmp.ne.s32.totalorder %s34, %s50
      %p52 = scmp.eq.s32.totalorder %s26, 0
      %p53 = por %p51, %p52
      %s55 = sadd.s32 %s54, 1
      %p58 = scmp.eq.s32.totalorder %s20, 1
      %p59 = scmp.ne.s32.totalorder %s54, %s56
      %p60 = scmp.eq.s32.totalorder %s20, 0
      %p61 = por %p59, %p60
      %p62 = scmp.ne.s32.totalorder %s54, %s56
      %p63 = scmp.eq.s32.totalorder %s25, 1
      %p64 = por %p62, %p63
      %p65 = scmp.ne.s32.totalorder %s56, %s57
      %p66 = scmp.eq.s32.totalorder %s25, 0
      %p67 = por %p65, %p66
      %p68 = scmp.ne.s32.totalorder %s56, %s57
      %p69 = scmp.eq.s32.totalorder %s26, 1
      %p70 = por %p68, %p69
      %p72 = scmp.ne.s32.totalorder %s57, %s71
      %p73 = scmp.eq.s32.totalorder %s26, 0
      %p74 = por %p72, %p73
      %s76 = sadd.s32 %s75, 1
      %p79 = scmp.eq.s32.totalorder %s20, 1
      %p80 = scmp.ne.s32.totalorder %s75, %s77
      %p81 = scmp.eq.s32.totalorder %s20, 0
      %p82 = por %p80, %p81
      %p83 = scmp.ne.s32.totalorder %s75, %s77
      %p84 = scmp.eq.s32.totalorder %s25, 1
      %p85 = por %p83, %p84
      %p86 = scmp.ne.s32.totalorder %s77, %s78
      %p87 = scmp.eq.s32.totalorder %s25, 0
      %p88 = por %p86, %p87
      %p89 = scmp.ne.s32.totalorder %s77, %s78
      %p90 = scmp.eq.s32.totalorder %s26, 1
      %p91 = por %p89, %p90
      %p93 = scmp.ne.s32.totalorder %s78, %s92
      %p94 = scmp.eq.s32.totalorder %s26, 0
      %p95 = por %p93, %p94
      %s97 = sadd.s32 %s96, 1
      %p100 = scmp.eq.s32.totalorder %s20, 1
      %p101 = scmp.ne.s32.totalorder %s96, %s98
      %p102 = scmp.eq.s32.totalorder %s20, 0
      %p103 = por %p101, %p102
      %p104 = scmp.ne.s32.totalorder %s96, %s98
      %p105 = scmp.eq.s32.totalorder %s25, 1
      %p106 = por %p104, %p105
      %p107 = scmp.ne.s32.totalorder %s98, %s99
      %p108 = scmp.eq.s32.totalorder %s25, 0
      %p109 = por %p107, %p108
      %p110 = scmp.ne.s32.totalorder %s98, %s99
      %p111 = scmp.eq.s32.totalorder %s26, 1
      %p112 = por %p110, %p111
      %p114 = scmp.ne.s32.totalorder %s99, %s113
      %p115 = scmp.eq.s32.totalorder %s26, 0
      %p116 = por %p114, %p115
      %s118 = sadd.s32 %s117, 1
      %p121 = scmp.eq.s32.totalorder %s20, 1
      %p122 = scmp.ne.s32.totalorder %s117, %s119
      %p123 = scmp.eq.s32.totalorder %s20, 0
      %p124 = por %p122, %p123
      %p125 = scmp.ne.s32.totalorder %s117, %s119
      %p126 = scmp.eq.s32.totalorder %s25, 1
      %p127 = por %p125, %p126
      %p128 = scmp.ne.s32.totalorder %s119, %s120
      %p129 = scmp.eq.s32.totalorder %s25, 0
      %p130 = por %p128, %p129
      %p131 = scmp.ne.s32.totalorder %s119, %s120
      %p132 = scmp.eq.s32.totalorder %s26, 1
      %p133 = por %p131, %p132
      %p135 = scmp.ne.s32.totalorder %s120, %s134
      %p136 = scmp.eq.s32.totalorder %s26, 0
      %p137 = por %p135, %p136
      %s139 = sadd.s32 %s138, 1
      %p142 = scmp.eq.s32.totalorder %s20, 1
      %p143 = scmp.ne.s32.totalorder %s138, %s140
      %p144 = scmp.eq.s32.totalorder %s20, 0
      %p145 = por %p143, %p144
      %p146 = scmp.ne.s32.totalorder %s138, %s140
      %p147 = scmp.eq.s32.totalorder %s25, 1
      %p148 = por %p146, %p147
      %p149 = scmp.ne.s32.totalorder %s140, %s141
      %p150 = scmp.eq.s32.totalorder %s25, 0
      %p151 = por %p149, %p150
      %p152 = scmp.ne.s32.totalorder %s140, %s141
      %p153 = scmp.eq.s32.totalorder %s26, 1
      %p154 = por %p152, %p153
      %p156 = scmp.ne.s32.totalorder %s141, %s155
      %p157 = scmp.eq.s32.totalorder %s26, 0
      %p158 = por %p156, %p157
      %s159 = ssub.s32 %s20, %s27
      %p160 = scmp.eq.s32.totalorder %s159, 0
      %s162 = sadd.s32 %s161, 1
      %s163 = scalar_select %p160, %s161, %s162
      %p166 = pneg %p160
      %p167 = scmp.eq.s32.totalorder %s20, 1
      %p168 = por %p166, %p167
      %p169 = scmp.ne.s32.totalorder %s161, %s164
      %p170 = scmp.eq.s32.totalorder %s20, 0
      %p171 = por %p169, %p170
      %p172 = scmp.ne.s32.totalorder %s161, %s164
      %p173 = scmp.eq.s32.totalorder %s25, 1
      %p174 = por %p172, %p173
      %p175 = scmp.ne.s32.totalorder %s164, %s165
      %p176 = scmp.eq.s32.totalorder %s25, 0
      %p177 = por %p175, %p176
      %p178 = scmp.ne.s32.totalorder %s164, %s165
      %p179 = scmp.eq.s32.totalorder %s26, 1
      %p180 = por %p178, %p179
      %p182 = scmp.ne.s32.totalorder %s165, %s181
      %p183 = scmp.eq.s32.totalorder %s26, 0
      %p184 = por %p182, %p183
      %p185 = scmp.le.s32.totalorder 1, %s20
      %p186 = scmp.lt.s32.totalorder %s20, 3
      %p187 = pnand %p185, %p186
      %p188 = pneg %p187
      // Predicated region
      $region9: #{tpu_custom_call.1} parent=5 // pred_check
        _
      $region10: #{tpu_custom_call.1} parent=5 // pred_check_branch
        %190 = sbr.rel (%p187) target = $region12
      $region11: #{tpu_custom_call.1} parent=5 // pred_region
        %s191 = ssub.s32 %s20, 1
        // Predicated region
        $region13: #{tpu_custom_call.1} parent=11 // pred_check
          %p192 = pneg %p67
        $region14: #{tpu_custom_call.1} parent=11 // pred_check_branch
          %194 = sbr.rel (%p192) target = $region16
        $region15: #{tpu_custom_call.1} parent=11 // pred_region
          %196 = vsyncadd [#allocation6], 0
          %s197 = sshll.u32 %s1, 4
          %s198 = int_to_ptr.hbm [resolvable:$true] %s197
          %s199 = sshll.u32 [#allocation5], 4
          %s200 = int_to_ptr.vmem [resolvable:$true] %s199
          %205 = dma.hbm_to_vmem [thread:$0]  %s198, 15360, %s200, [#allocation6], 192, 192, 12
        $region16: #{tpu_custom_call.1} parent=11 // pred_fallthru
          _
        // Predicated region
        $region17: #{tpu_custom_call.1} parent=11 // pred_check
          %p206 = pneg %p88
        $region18: #{tpu_custom_call.1} parent=11 // pred_check_branch
          %208 = sbr.rel (%p206) target = $region20
        $region19: #{tpu_custom_call.1} parent=11 // pred_region
          %210 = vsyncadd [#allocation6], 0
          %s212 = sshll.u32 %s2, 4
          %s213 = int_to_ptr.hbm [resolvable:$true] %s212
          %s214 = sshll.u32 [#allocation7], 4
          %s215 = int_to_ptr.vmem [resolvable:$true] %s214
          %217 = dma.hbm_to_vmem [thread:$0]  %s213, 48, %s215, [#allocation6]
        $region20: #{tpu_custom_call.1} parent=11 // pred_fallthru
          _
        // Predicated region
        $region21: #{tpu_custom_call.1} parent=11 // pred_check
          %p218 = pneg %p109
        $region22: #{tpu_custom_call.1} parent=11 // pred_check_branch
          %220 = sbr.rel (%p218) target = $region24
        $region23: #{tpu_custom_call.1} parent=11 // pred_region
          %222 = vsyncadd [#allocation9], 0
          %s223 = sshll.u32 %s3, 4
          %s224 = int_to_ptr.hbm [resolvable:$true] %s223
          %s225 = sshll.u32 [#allocation8], 4
          %s226 = int_to_ptr.vmem [resolvable:$true] %s225
          %231 = dma.hbm_to_vmem [thread:$0]  %s224, 768, %s226, [#allocation9], 384, 384, 24
        $region24: #{tpu_custom_call.1} parent=11 // pred_fallthru
          _
        // Predicated region
        $region25: #{tpu_custom_call.1} parent=11 // pred_check
          %p232 = pneg %p130
        $region26: #{tpu_custom_call.1} parent=11 // pred_check_branch
          %234 = sbr.rel (%p232) target = $region28
        $region27: #{tpu_custom_call.1} parent=11 // pred_region
          %236 = vsyncadd [#allocation9], 0
          %s237 = sshll.u32 %s4, 4
          %s238 = int_to_ptr.hbm [resolvable:$true] %s237
          %s239 = sshll.u32 [#allocation10], 4
          %s240 = int_to_ptr.vmem [resolvable:$true] %s239
          %245 = dma.hbm_to_vmem [thread:$0]  %s238, 6144, %s240, [#allocation9], 128, 128, 8
        $region28: #{tpu_custom_call.1} parent=11 // pred_fallthru
          _
        // Predicated region
        $region29: #{tpu_custom_call.1} parent=11 // pred_check
          %p246 = pneg %p151
        $region30: #{tpu_custom_call.1} parent=11 // pred_check_branch
          %248 = sbr.rel (%p246) target = $region32
        $region31: #{tpu_custom_call.1} parent=11 // pred_region
          _
        $region32: #{tpu_custom_call.1} parent=11 // pred_fallthru
          _
      $region12: #{tpu_custom_call.1} parent=5 // pred_fallthru
        _
      %p249 = scmp.lt.s32.totalorder %s20, 2
      // Predicated region
      $region33: #{tpu_custom_call.1} parent=5 // pred_check
        %p250 = pneg %p249
      $region34: #{tpu_custom_call.1} parent=5 // pred_check_branch
        %252 = sbr.rel (%p250) target = $region36
      $region35: #{tpu_custom_call.1} parent=5 // pred_region
        // Predicated region
        $region37: #{tpu_custom_call.1} parent=35 // pred_check
          %p253 = pneg %p40
        $region38: #{tpu_custom_call.1} parent=35 // pred_check_branch
          %255 = sbr.rel (%p253) target = $region40
        $region39: #{tpu_custom_call.1} parent=35 // pred_region
          %s256 = sand.u32 %s30, 1
          %s257 = scalar_lea.sflag [#allocation3], %s256
          %s258 = sand.u32 %s30, 1
          %s259 = smul.addr %s258, 128
          %s260 = scalar_lea.vmem [#allocation2], %s259
          %s261 = smul.u32 8, %s20
          %263 = vsyncadd %s257, 0
          %s264 = smul.addr %s261, 4
          %s265 = smul.addr %s264, 4
          %s266 = scalar_lea.hbm %s0, %s265
          %s267 = sshll.u32 %s266, 4
          %s268 = int_to_ptr.hbm [resolvable:$true] %s267
          %s269 = sshll.u32 %s260, 4
          %s270 = int_to_ptr.vmem [resolvable:$true] %s269
          %275 = dma.hbm_to_vmem [thread:$0]  %s268, 2048, %s270, %s257, 64, 64, 4
        $region40: #{tpu_custom_call.1} parent=35 // pred_fallthru
          _
      $region36: #{tpu_custom_call.1} parent=5 // pred_fallthru
        _
      %p276 = scmp.le.s32.totalorder 1, %s20
      %p277 = scmp.lt.s32.totalorder %s20, 3
      %p278 = pnand %p276, %p277
      %p279 = pneg %p278
      // Predicated region
      $region41: #{tpu_custom_call.1} parent=5 // pred_check
        _
      $region42: #{tpu_custom_call.1} parent=5 // pred_check_branch
        %281 = sbr.rel (%p278) target = $region44
      $region43: #{tpu_custom_call.1} parent=5 // pred_region
        %s282 = ssub.s32 %s20, 1
        %s283 = sand.u32 %s33, 1
        %s284 = scalar_lea.sflag [#allocation3], %s283
        %s285 = sand.u32 %s33, 1
        %s286 = smul.addr %s285, 128
        %s287 = scalar_lea.vmem [#allocation2], %s286
        // Predicated region
        $region45: #{tpu_custom_call.1} parent=43 // pred_check
          %p288 = pneg %p46
        $region46: #{tpu_custom_call.1} parent=43 // pred_check_branch
          %290 = sbr.rel (%p288) target = $region48
        $region47: #{tpu_custom_call.1} parent=43 // pred_region
          %292 = dma.done %s284, 2048
        $region48: #{tpu_custom_call.1} parent=43 // pred_fallthru
          _
        // Predicated region
        $region49: #{tpu_custom_call.1} parent=43 // pred_check
          %p293 = pneg %p67
        $region50: #{tpu_custom_call.1} parent=43 // pred_check_branch
          %295 = sbr.rel (%p293) target = $region52
        $region51: #{tpu_custom_call.1} parent=43 // pred_region
          %297 = dma.done [#allocation6], 15360
        $region52: #{tpu_custom_call.1} parent=43 // pred_fallthru
          _
        // Predicated region
        $region53: #{tpu_custom_call.1} parent=43 // pred_check
          %p298 = pneg %p88
        $region54: #{tpu_custom_call.1} parent=43 // pred_check_branch
          %300 = sbr.rel (%p298) target = $region56
        $region55: #{tpu_custom_call.1} parent=43 // pred_region
          %302 = dma.done [#allocation6], 48
        $region56: #{tpu_custom_call.1} parent=43 // pred_fallthru
          _
        // Predicated region
        $region57: #{tpu_custom_call.1} parent=43 // pred_check
          %p303 = pneg %p109
        $region58: #{tpu_custom_call.1} parent=43 // pred_check_branch
          %305 = sbr.rel (%p303) target = $region60
        $region59: #{tpu_custom_call.1} parent=43 // pred_region
          %307 = dma.done [#allocation9], 768
        $region60: #{tpu_custom_call.1} parent=43 // pred_fallthru
          _
        // Predicated region
        $region61: #{tpu_custom_call.1} parent=43 // pred_check
          %p308 = pneg %p130
        $region62: #{tpu_custom_call.1} parent=43 // pred_check_branch
          %310 = sbr.rel (%p308) target = $region64
        $region63: #{tpu_custom_call.1} parent=43 // pred_region
          %312 = dma.done [#allocation9], 6144
        $region64: #{tpu_custom_call.1} parent=43 // pred_fallthru
          _
        %s313 = sand.u32 %s33, 1
        %s314 = scalar_lea.sflag [#allocation3], %s313
        %s315 = sand.u32 %s33, 1
        %s316 = smul.addr %s315, 128
        %s317 = scalar_lea.vmem [#allocation2], %s316
        %p318 = pneg %p46
        %p319 = pneg %p43
        %p320 = pneg %p67
        %p321 = pneg %p64
        %p322 = pneg %p88
        %p323 = pneg %p85
        %p324 = pneg %p109
        %p325 = pneg %p106
        %p326 = pneg %p130
        %p327 = pneg %p127
        %p328 = pneg %p151
        %p329 = pneg %p148
        %p330 = pneg %p177
        %p331 = pneg %p174
        %s332 = sand.u32 %s164, 1
        %s333 = scalar_lea.sflag [#allocation4], %s332
        %s334 = sand.u32 %s164, 1
        %s335 = smul.addr %s334, 8
        %s336 = scalar_lea.vmem [#allocation11], %s335
        %s337 = smul.u32 8, %s25
        %v338 = vld [vmem:[#allocation5] sm:$0xff]
        %v339 = vld [vmem:[#allocation5 + $0x8] sm:$0xf]
        %v340 = vld [vmem:[#allocation5 + $0xc] sm:$0xff]
        %v341 = vld [vmem:[#allocation5 + $0x14] sm:$0xf]
        %v342 = vld [vmem:[#allocation5 + $0x18] sm:$0xff]
        %v343 = vld [vmem:[#allocation5 + $0x20] sm:$0xf]
        %v344 = vld [vmem:[#allocation5 + $0x24] sm:$0xff]
        %v345 = vld [vmem:[#allocation5 + $0x2c] sm:$0xf]
        %v346 = vld [vmem:[#allocation5 + $0x30] sm:$0xff]
        %v347 = vld [vmem:[#allocation5 + $0x38] sm:$0xf]
        %v348 = vld [vmem:[#allocation5 + $0x3c] sm:$0xff]
        %v349 = vld [vmem:[#allocation5 + $0x44] sm:$0xf]
        %v350 = vld [vmem:[#allocation5 + $0x48] sm:$0xff]
        %v351 = vld [vmem:[#allocation5 + $0x50] sm:$0xf]
        %v352 = vld [vmem:[#allocation5 + $0x54] sm:$0xff]
        %v353 = vld [vmem:[#allocation5 + $0x5c] sm:$0xf]
        %v354 = vld [vmem:[#allocation5 + $0x60] sm:$0xff]
        %v355 = vld [vmem:[#allocation5 + $0x68] sm:$0xf]
        %v356 = vld [vmem:[#allocation5 + $0x6c] sm:$0xff]
        %v357 = vld [vmem:[#allocation5 + $0x74] sm:$0xf]
        %v358 = vld [vmem:[#allocation5 + $0x78] sm:$0xff]
        %v359 = vld [vmem:[#allocation5 + $0x80] sm:$0xf]
        %v360 = vld [vmem:[#allocation5 + $0x84] sm:$0xff]
        %v361 = vld [vmem:[#allocation5 + $0x8c] sm:$0xf]
        %v362 = vld [vmem:[#allocation5 + $0x90] sm:$0xff]
        %v363 = vld [vmem:[#allocation5 + $0x98] sm:$0xf]
        %v364 = vld [vmem:[#allocation5 + $0x9c] sm:$0xff]
        %v365 = vld [vmem:[#allocation5 + $0xa4] sm:$0xf]
        %v366 = vld [vmem:[#allocation5 + $0xa8] sm:$0xff]
        %v367 = vld [vmem:[#allocation5 + $0xb0] sm:$0xf]
        %v368 = vld [vmem:[#allocation5 + $0xb4] sm:$0xff]
        %v369 = vld [vmem:[#allocation5 + $0xbc] sm:$0xf]
        %v370 = vld [vmem:[#allocation5 + $0xc0] sm:$0xff]
        %v371 = vld [vmem:[#allocation5 + $0xc8] sm:$0xf]
        %v372 = vld [vmem:[#allocation5 + $0xcc] sm:$0xff]
        %v373 = vld [vmem:[#allocation5 + $0xd4] sm:$0xf]
        %v374 = vld [vmem:[#allocation5 + $0xd8] sm:$0xff]
        %v375 = vld [vmem:[#allocation5 + $0xe0] sm:$0xf]
        %v376 = vld [vmem:[#allocation5 + $0xe4] sm:$0xff]
        %v377 = vld [vmem:[#allocation5 + $0xec] sm:$0xf]
        %v378 = vld [vmem:[#allocation5 + $0xf0] sm:$0xff]
        %v379 = vld [vmem:[#allocation5 + $0xf8] sm:$0xf]
        %v380 = vld [vmem:[#allocation5 + $0xfc] sm:$0xff]
        %v381 = vld [vmem:[#allocation5 + $0x104] sm:$0xf]
        %v382 = vld [vmem:[#allocation5 + $0x108] sm:$0xff]
        %v383 = vld [vmem:[#allocation5 + $0x110] sm:$0xf]
        %v384 = vld [vmem:[#allocation5 + $0x114] sm:$0xff]
        %v385 = vld [vmem:[#allocation5 + $0x11c] sm:$0xf]
        %v386 = vld [vmem:[#allocation5 + $0x120] sm:$0xff]
        %v387 = vld [vmem:[#allocation5 + $0x128] sm:$0xf]
        %v388 = vld [vmem:[#allocation5 + $0x12c] sm:$0xff]
        %v389 = vld [vmem:[#allocation5 + $0x134] sm:$0xf]
        %v390 = vld [vmem:[#allocation5 + $0x138] sm:$0xff]
        %v391 = vld [vmem:[#allocation5 + $0x140] sm:$0xf]
        %v392 = vld [vmem:[#allocation5 + $0x144] sm:$0xff]
        %v393 = vld [vmem:[#allocation5 + $0x14c] sm:$0xf]
        %v394 = vld [vmem:[#allocation5 + $0x150] sm:$0xff]
        %v395 = vld [vmem:[#allocation5 + $0x158] sm:$0xf]
        %v396 = vld [vmem:[#allocation5 + $0x15c] sm:$0xff]
        %v397 = vld [vmem:[#allocation5 + $0x164] sm:$0xf]
        %v398 = vld [vmem:[#allocation5 + $0x168] sm:$0xff]
        %v399 = vld [vmem:[#allocation5 + $0x170] sm:$0xf]
        %v400 = vld [vmem:[#allocation5 + $0x174] sm:$0xff]
        %v401 = vld [vmem:[#allocation5 + $0x17c] sm:$0xf]
        %v402 = vld [vmem:[#allocation5 + $0x180] sm:$0xff]
        %v403 = vld [vmem:[#allocation5 + $0x188] sm:$0xf]
        %v404 = vld [vmem:[#allocation5 + $0x18c] sm:$0xff]
        %v405 = vld [vmem:[#allocation5 + $0x194] sm:$0xf]
        %v406 = vld [vmem:[#allocation5 + $0x198] sm:$0xff]
        %v407 = vld [vmem:[#allocation5 + $0x1a0] sm:$0xf]
        %v408 = vld [vmem:[#allocation5 + $0x1a4] sm:$0xff]
        %v409 = vld [vmem:[#allocation5 + $0x1ac] sm:$0xf]
        %v410 = vld [vmem:[#allocation5 + $0x1b0] sm:$0xff]
        %v411 = vld [vmem:[#allocation5 + $0x1b8] sm:$0xf]
        %v412 = vld [vmem:[#allocation5 + $0x1bc] sm:$0xff]
        %v413 = vld [vmem:[#allocation5 + $0x1c4] sm:$0xf]
        %v414 = vld [vmem:[#allocation5 + $0x1c8] sm:$0xff]
        %v415 = vld [vmem:[#allocation5 + $0x1d0] sm:$0xf]
        %v416 = vld [vmem:[#allocation5 + $0x1d4] sm:$0xff]
        %v417 = vld [vmem:[#allocation5 + $0x1dc] sm:$0xf]
        %v418 = vld [vmem:[#allocation5 + $0x1e0] sm:$0xff]
        %v419 = vld [vmem:[#allocation5 + $0x1e8] sm:$0xf]
        %v420 = vld [vmem:[#allocation5 + $0x1ec] sm:$0xff]
        %v421 = vld [vmem:[#allocation5 + $0x1f4] sm:$0xf]
        %v422 = vld [vmem:[#allocation5 + $0x1f8] sm:$0xff]
        %v423 = vld [vmem:[#allocation5 + $0x200] sm:$0xf]
        %v424 = vld [vmem:[#allocation5 + $0x204] sm:$0xff]
        %v425 = vld [vmem:[#allocation5 + $0x20c] sm:$0xf]
        %v426 = vld [vmem:[#allocation5 + $0x210] sm:$0xff]
        %v427 = vld [vmem:[#allocation5 + $0x218] sm:$0xf]
        %v428 = vld [vmem:[#allocation5 + $0x21c] sm:$0xff]
        %v429 = vld [vmem:[#allocation5 + $0x224] sm:$0xf]
        %v430 = vld [vmem:[#allocation5 + $0x228] sm:$0xff]
        %v431 = vld [vmem:[#allocation5 + $0x230] sm:$0xf]
        %v432 = vld [vmem:[#allocation5 + $0x234] sm:$0xff]
        %v433 = vld [vmem:[#allocation5 + $0x23c] sm:$0xf]
        %v434 = vld [vmem:[#allocation5 + $0x240] sm:$0xff]
        %v435 = vld [vmem:[#allocation5 + $0x248] sm:$0xf]
        %v436 = vld [vmem:[#allocation5 + $0x24c] sm:$0xff]
        %v437 = vld [vmem:[#allocation5 + $0x254] sm:$0xf]
        %v438 = vld [vmem:[#allocation5 + $0x258] sm:$0xff]
        %v439 = vld [vmem:[#allocation5 + $0x260] sm:$0xf]
        %v440 = vld [vmem:[#allocation5 + $0x264] sm:$0xff]
        %v441 = vld [vmem:[#allocation5 + $0x26c] sm:$0xf]
        %v442 = vld [vmem:[#allocation5 + $0x270] sm:$0xff]
        %v443 = vld [vmem:[#allocation5 + $0x278] sm:$0xf]
        %v444 = vld [vmem:[#allocation5 + $0x27c] sm:$0xff]
        %v445 = vld [vmem:[#allocation5 + $0x284] sm:$0xf]
        %v446 = vld [vmem:[#allocation5 + $0x288] sm:$0xff]
        %v447 = vld [vmem:[#allocation5 + $0x290] sm:$0xf]
        %v448 = vld [vmem:[#allocation5 + $0x294] sm:$0xff]
        %v449 = vld [vmem:[#allocation5 + $0x29c] sm:$0xf]
        %v450 = vld [vmem:[#allocation5 + $0x2a0] sm:$0xff]
        %v451 = vld [vmem:[#allocation5 + $0x2a8] sm:$0xf]
        %v452 = vld [vmem:[#allocation5 + $0x2ac] sm:$0xff]
        %v453 = vld [vmem:[#allocation5 + $0x2b4] sm:$0xf]
        %v454 = vld [vmem:[#allocation5 + $0x2b8] sm:$0xff]
        %v455 = vld [vmem:[#allocation5 + $0x2c0] sm:$0xf]
        %v456 = vld [vmem:[#allocation5 + $0x2c4] sm:$0xff]
        %v457 = vld [vmem:[#allocation5 + $0x2cc] sm:$0xf]
        %v458 = vld [vmem:[#allocation5 + $0x2d0] sm:$0xff]
        %v459 = vld [vmem:[#allocation5 + $0x2d8] sm:$0xf]
        %v460 = vld [vmem:[#allocation5 + $0x2dc] sm:$0xff]
        %v461 = vld [vmem:[#allocation5 + $0x2e4] sm:$0xf]
        %v462 = vld [vmem:[#allocation5 + $0x2e8] sm:$0xff]
        %v463 = vld [vmem:[#allocation5 + $0x2f0] sm:$0xf]
        %v464 = vld [vmem:[#allocation5 + $0x2f4] sm:$0xff]
        %v465 = vld [vmem:[#allocation5 + $0x2fc] sm:$0xf]
        %v466 = vld [vmem:[#allocation5 + $0x300] sm:$0xff]
        %v467 = vld [vmem:[#allocation5 + $0x308] sm:$0xf]
        %v468 = vld [vmem:[#allocation5 + $0x30c] sm:$0xff]
        %v469 = vld [vmem:[#allocation5 + $0x314] sm:$0xf]
        %v470 = vld [vmem:[#allocation5 + $0x318] sm:$0xff]
        %v471 = vld [vmem:[#allocation5 + $0x320] sm:$0xf]
        %v472 = vld [vmem:[#allocation5 + $0x324] sm:$0xff]
        %v473 = vld [vmem:[#allocation5 + $0x32c] sm:$0xf]
        %v474 = vld [vmem:[#allocation5 + $0x330] sm:$0xff]
        %v475 = vld [vmem:[#allocation5 + $0x338] sm:$0xf]
        %v476 = vld [vmem:[#allocation5 + $0x33c] sm:$0xff]
        %v477 = vld [vmem:[#allocation5 + $0x344] sm:$0xf]
        %v478 = vld [vmem:[#allocation5 + $0x348] sm:$0xff]
        %v479 = vld [vmem:[#allocation5 + $0x350] sm:$0xf]
        %v480 = vld [vmem:[#allocation5 + $0x354] sm:$0xff]
        %v481 = vld [vmem:[#allocation5 + $0x35c] sm:$0xf]
        %v482 = vld [vmem:[#allocation5 + $0x360] sm:$0xff]
        %v483 = vld [vmem:[#allocation5 + $0x368] sm:$0xf]
        %v484 = vld [vmem:[#allocation5 + $0x36c] sm:$0xff]
        %v485 = vld [vmem:[#allocation5 + $0x374] sm:$0xf]
        %v486 = vld [vmem:[#allocation5 + $0x378] sm:$0xff]
        %v487 = vld [vmem:[#allocation5 + $0x380] sm:$0xf]
        %v488 = vld [vmem:[#allocation5 + $0x384] sm:$0xff]
        %v489 = vld [vmem:[#allocation5 + $0x38c] sm:$0xf]
        %v490 = vld [vmem:[#allocation5 + $0x390] sm:$0xff]
        %v491 = vld [vmem:[#allocation5 + $0x398] sm:$0xf]
        %v492 = vld [vmem:[#allocation5 + $0x39c] sm:$0xff]
        %v493 = vld [vmem:[#allocation5 + $0x3a4] sm:$0xf]
        %v494 = vld [vmem:[#allocation5 + $0x3a8] sm:$0xff]
        %v495 = vld [vmem:[#allocation5 + $0x3b0] sm:$0xf]
        %v496 = vld [vmem:[#allocation5 + $0x3b4] sm:$0xff]
        %v497 = vld [vmem:[#allocation5 + $0x3bc] sm:$0xf]
        %v498 = vld [vmem:[%s287] sm:$0xf]
        %v499 = vld [vmem:[%s287 + $0x4] sm:$0xf]
        %v500 = vld [vmem:[%s287 + $0x8] sm:$0xf]
        %v501 = vld [vmem:[%s287 + $0x10] sm:$0xf]
        %v502 = vld [vmem:[%s287 + $0x14] sm:$0xf]
        %v503 = vld [vmem:[%s287 + $0x18] sm:$0xf]
        %v504 = vld [vmem:[%s287 + $0x20] sm:$0xf]
        %v505 = vld [vmem:[%s287 + $0x24] sm:$0xf]
        %v506 = vld [vmem:[%s287 + $0x28] sm:$0xf]
        %v507 = vld [vmem:[%s287 + $0x30] sm:$0xf]
        %v508 = vld [vmem:[%s287 + $0x34] sm:$0xf]
        %v509 = vld [vmem:[%s287 + $0x38] sm:$0xf]
        %v510 = vld [vmem:[%s287 + $0x40] sm:$0xf]
        %v511 = vld [vmem:[%s287 + $0x44] sm:$0xf]
        %v512 = vld [vmem:[%s287 + $0x48] sm:$0xf]
        %v513 = vld [vmem:[%s287 + $0x50] sm:$0xf]
        %v514 = vld [vmem:[%s287 + $0x54] sm:$0xf]
        %v515 = vld [vmem:[%s287 + $0x58] sm:$0xf]
        %v516 = vld [vmem:[%s287 + $0x60] sm:$0xf]
        %v517 = vld [vmem:[%s287 + $0x64] sm:$0xf]
        %v518 = vld [vmem:[%s287 + $0x68] sm:$0xf]
        %v519 = vld [vmem:[%s287 + $0x70] sm:$0xf]
        %v520 = vld [vmem:[%s287 + $0x74] sm:$0xf]
        %v521 = vld [vmem:[%s287 + $0x78] sm:$0xf]
        %v522 = vld [vmem:[#allocation8] sm:$0xff]
        %v523 = vld [vmem:[#allocation8 + $0x8] sm:$0xff]
        %v524 = vld [vmem:[#allocation8 + $0x10] sm:$0xff]
        %v525 = vld [vmem:[#allocation8 + $0x18] sm:$0xff]
        %v526 = vld [vmem:[#allocation8 + $0x20] sm:$0xff]
        %v527 = vld [vmem:[#allocation8 + $0x28] sm:$0xff]
        %v544 = vunpack.c.l.b16 %v498
        %v545 = vunpack.c.l.b16 %v499
        %v546 = vunpack.c.l.b16 %v501
        %v547 = vunpack.c.l.b16 %v502
        %v548 = vunpack.c.l.b16 %v504
        %v549 = vunpack.c.l.b16 %v505
        %v550 = vunpack.c.l.b16 %v507
        %v551 = vunpack.c.l.b16 %v508
        %v552 = vunpack.c.l.b16 %v510
        %v553 = vunpack.c.l.b16 %v511
        %v554 = vunpack.c.l.b16 %v513
        %v555 = vunpack.c.l.b16 %v514
        %v556 = vunpack.c.l.b16 %v516
        %v557 = vunpack.c.l.b16 %v517
        %v558 = vunpack.c.l.b16 %v519
        %v559 = vunpack.c.l.b16 %v520
        %v560 = vpack.c.b16 %v545, %v544
        %v561 = vpack.c.b16 %v547, %v546
        %v562 = vpack.c.b16 %v549, %v548
        %v563 = vpack.c.b16 %v551, %v550
        %v564 = vpack.c.b16 %v553, %v552
        %v565 = vpack.c.b16 %v555, %v554
        %v566 = vpack.c.b16 %v557, %v556
        %v567 = vpack.c.b16 %v559, %v558
        %v584 = vunpack.c.l.b16 %v500
        %v585 = vunpack.c.l.b16 %v503
        %v586 = vunpack.c.l.b16 %v506
        %v587 = vunpack.c.l.b16 %v509
        %v588 = vunpack.c.l.b16 %v512
        %v589 = vunpack.c.l.b16 %v515
        %v590 = vunpack.c.l.b16 %v518
        %v591 = vunpack.c.l.b16 %v521
        %v592 = vpack.c.b16 %v584, %v584
        %v593 = vpack.c.b16 %v585, %v585
        %v594 = vpack.c.b16 %v586, %v586
        %v595 = vpack.c.b16 %v587, %v587
        %v596 = vpack.c.b16 %v588, %v588
        %v597 = vpack.c.b16 %v589, %v589
        %v598 = vpack.c.b16 %v590, %v590
        %v599 = vpack.c.b16 %v591, %v591
        %vm600 = vsmask.f32 7424
        %v602 = vshrl.u32 %v560, 16
        %v604 = vshll.u32 %v560, 16
        %v606 = vrot.slane %v604, 1
        %v607 = vor.u32 %v602, %v606
        %v609 = vshll.u32 %v592, 16
        %v611 = vrot.slane %v609, 1
        %v612 = vsel %vm600, %v607, %v611
        %v614 = vshrl.u32 %v561, 16
        %v616 = vshll.u32 %v561, 16
        %v618 = vrot.slane %v616, 1
        %v619 = vor.u32 %v614, %v618
        %v621 = vshll.u32 %v593, 16
        %v623 = vrot.slane %v621, 1
        %v624 = vsel %vm600, %v619, %v623
        %v626 = vshrl.u32 %v562, 16
        %v628 = vshll.u32 %v562, 16
        %v630 = vrot.slane %v628, 1
        %v631 = vor.u32 %v626, %v630
        %v633 = vshll.u32 %v594, 16
        %v635 = vrot.slane %v633, 1
        %v636 = vsel %vm600, %v631, %v635
        %v638 = vshrl.u32 %v563, 16
        %v640 = vshll.u32 %v563, 16
        %v642 = vrot.slane %v640, 1
        %v643 = vor.u32 %v638, %v642
        %v645 = vshll.u32 %v595, 16
        %v647 = vrot.slane %v645, 1
        %v648 = vsel %vm600, %v643, %v647
        %v650 = vshrl.u32 %v564, 16
        %v652 = vshll.u32 %v564, 16
        %v654 = vrot.slane %v652, 1
        %v655 = vor.u32 %v650, %v654
        %v657 = vshll.u32 %v596, 16
        %v659 = vrot.slane %v657, 1
        %v660 = vsel %vm600, %v655, %v659
        %v662 = vshrl.u32 %v565, 16
        %v664 = vshll.u32 %v565, 16
        %v666 = vrot.slane %v664, 1
        %v667 = vor.u32 %v662, %v666
        %v669 = vshll.u32 %v597, 16
        %v671 = vrot.slane %v669, 1
        %v672 = vsel %vm600, %v667, %v671
        %v674 = vshrl.u32 %v566, 16
        %v676 = vshll.u32 %v566, 16
        %v678 = vrot.slane %v676, 1
        %v679 = vor.u32 %v674, %v678
        %v681 = vshll.u32 %v598, 16
        %v683 = vrot.slane %v681, 1
        %v684 = vsel %vm600, %v679, %v683
        %v686 = vshrl.u32 %v567, 16
        %v688 = vshll.u32 %v567, 16
        %v690 = vrot.slane %v688, 1
        %v691 = vor.u32 %v686, %v690
        %v693 = vshll.u32 %v599, 16
        %v695 = vrot.slane %v693, 1
        %v696 = vsel %vm600, %v691, %v695
        %vm705 = vcmask 1046528
        %v706 = vrot.slane %v560, 1
        %v707 = vrot.slane %v592, 1
        %v708 = vsel %vm705, %v706, %v707
        %v709 = vrot.slane %v561, 1
        %v710 = vrot.slane %v593, 1
        %v711 = vsel %vm705, %v709, %v710
        %v712 = vrot.slane %v562, 1
        %v713 = vrot.slane %v594, 1
        %v714 = vsel %vm705, %v712, %v713
        %v715 = vrot.slane %v563, 1
        %v716 = vrot.slane %v595, 1
        %v717 = vsel %vm705, %v715, %v716
        %v718 = vrot.slane %v564, 1
        %v719 = vrot.slane %v596, 1
        %v720 = vsel %vm705, %v718, %v719
        %v721 = vrot.slane %v565, 1
        %v722 = vrot.slane %v597, 1
        %v723 = vsel %vm705, %v721, %v722
        %v724 = vrot.slane %v566, 1
        %v725 = vrot.slane %v598, 1
        %v726 = vsel %vm705, %v724, %v725
        %v727 = vrot.slane %v567, 1
        %v728 = vrot.slane %v599, 1
        %v729 = vsel %vm705, %v727, %v728
        %vm738 = vsmask.f32 6400
        %v739 = vrot.slane %v602, 1
        %v740 = vrot.slane %v604, 2
        %v741 = vor.u32 %v739, %v740
        %v742 = vshrl.u32 %v592, 16
        %v744 = vrot.slane %v742, 1
        %v745 = vrot.slane %v609, 2
        %v746 = vor.u32 %v744, %v745
        %v747 = vsel %vm738, %v741, %v746
        %v748 = vrot.slane %v614, 1
        %v749 = vrot.slane %v616, 2
        %v750 = vor.u32 %v748, %v749
        %v751 = vshrl.u32 %v593, 16
        %v753 = vrot.slane %v751, 1
        %v754 = vrot.slane %v621, 2
        %v755 = vor.u32 %v753, %v754
        %v756 = vsel %vm738, %v750, %v755
        %v757 = vrot.slane %v626, 1
        %v758 = vrot.slane %v628, 2
        %v759 = vor.u32 %v757, %v758
        %v760 = vshrl.u32 %v594, 16
        %v762 = vrot.slane %v760, 1
        %v763 = vrot.slane %v633, 2
        %v764 = vor.u32 %v762, %v763
        %v765 = vsel %vm738, %v759, %v764
        %v766 = vrot.slane %v638, 1
        %v767 = vrot.slane %v640, 2
        %v768 = vor.u32 %v766, %v767
        %v769 = vshrl.u32 %v595, 16
        %v771 = vrot.slane %v769, 1
        %v772 = vrot.slane %v645, 2
        %v773 = vor.u32 %v771, %v772
        %v774 = vsel %vm738, %v768, %v773
        %v775 = vrot.slane %v650, 1
        %v776 = vrot.slane %v652, 2
        %v777 = vor.u32 %v775, %v776
        %v778 = vshrl.u32 %v596, 16
        %v780 = vrot.slane %v778, 1
        %v781 = vrot.slane %v657, 2
        %v782 = vor.u32 %v780, %v781
        %v783 = vsel %vm738, %v777, %v782
        %v784 = vrot.slane %v662, 1
        %v785 = vrot.slane %v664, 2
        %v786 = vor.u32 %v784, %v785
        %v787 = vshrl.u32 %v597, 16
        %v789 = vrot.slane %v787, 1
        %v790 = vrot.slane %v669, 2
        %v791 = vor.u32 %v789, %v790
        %v792 = vsel %vm738, %v786, %v791
        %v793 = vrot.slane %v674, 1
        %v794 = vrot.slane %v676, 2
        %v795 = vor.u32 %v793, %v794
        %v796 = vshrl.u32 %v598, 16
        %v798 = vrot.slane %v796, 1
        %v799 = vrot.slane %v681, 2
        %v800 = vor.u32 %v798, %v799
        %v801 = vsel %vm738, %v795, %v800
        %v802 = vrot.slane %v686, 1
        %v803 = vrot.slane %v688, 2
        %v804 = vor.u32 %v802, %v803
        %v805 = vshrl.u32 %v599, 16
        %v807 = vrot.slane %v805, 1
        %v808 = vrot.slane %v693, 2
        %v809 = vor.u32 %v807, %v808
        %v810 = vsel %vm738, %v804, %v809
        %vm819 = vcmask 1045504
        %v820 = vrot.slane %v560, 2
        %v821 = vrot.slane %v592, 2
        %v822 = vsel %vm819, %v820, %v821
        %v823 = vrot.slane %v561, 2
        %v824 = vrot.slane %v593, 2
        %v825 = vsel %vm819, %v823, %v824
        %v826 = vrot.slane %v562, 2
        %v827 = vrot.slane %v594, 2
        %v828 = vsel %vm819, %v826, %v827
        %v829 = vrot.slane %v563, 2
        %v830 = vrot.slane %v595, 2
        %v831 = vsel %vm819, %v829, %v830
        %v832 = vrot.slane %v564, 2
        %v833 = vrot.slane %v596, 2
        %v834 = vsel %vm819, %v832, %v833
        %v835 = vrot.slane %v565, 2
        %v836 = vrot.slane %v597, 2
        %v837 = vsel %vm819, %v835, %v836
        %v838 = vrot.slane %v566, 2
        %v839 = vrot.slane %v598, 2
        %v840 = vsel %vm819, %v838, %v839
        %v841 = vrot.slane %v567, 2
        %v842 = vrot.slane %v599, 2
        %v843 = vsel %vm819, %v841, %v842
        %v1012 = vunpack.c.l.b16 %v338
        %v1013 = vunpack.c.h.b16 %v338
        %v1014 = vunpack.c.l.b16 %v339
        %v1015 = vunpack.c.l.b16 %v340
        %v1016 = vunpack.c.h.b16 %v340
        %v1017 = vunpack.c.l.b16 %v341
        %v1018 = vunpack.c.l.b16 %v342
        %v1019 = vunpack.c.h.b16 %v342
        %v1020 = vunpack.c.l.b16 %v343
        %v1021 = vunpack.c.l.b16 %v344
        %v1022 = vunpack.c.h.b16 %v344
        %v1023 = vunpack.c.l.b16 %v345
        %v1024 = vunpack.c.l.b16 %v346
        %v1025 = vunpack.c.h.b16 %v346
        %v1026 = vunpack.c.l.b16 %v347
        %v1027 = vunpack.c.l.b16 %v348
        %v1028 = vunpack.c.h.b16 %v348
        %v1029 = vunpack.c.l.b16 %v349
        %v1030 = vunpack.c.l.b16 %v350
        %v1031 = vunpack.c.h.b16 %v350
        %v1032 = vunpack.c.l.b16 %v351
        %v1033 = vunpack.c.l.b16 %v352
        %v1034 = vunpack.c.h.b16 %v352
        %v1035 = vunpack.c.l.b16 %v353
        %v1036 = vunpack.c.l.b16 %v354
        %v1037 = vunpack.c.h.b16 %v354
        %v1038 = vunpack.c.l.b16 %v355
        %v1039 = vunpack.c.l.b16 %v356
        %v1040 = vunpack.c.h.b16 %v356
        %v1041 = vunpack.c.l.b16 %v357
        %v1042 = vunpack.c.l.b16 %v358
        %v1043 = vunpack.c.h.b16 %v358
        %v1044 = vunpack.c.l.b16 %v359
        %v1045 = vunpack.c.l.b16 %v360
        %v1046 = vunpack.c.h.b16 %v360
        %v1047 = vunpack.c.l.b16 %v361
        %v1048 = vunpack.c.l.b16 %v362
        %v1049 = vunpack.c.h.b16 %v362
        %v1050 = vunpack.c.l.b16 %v363
        %v1051 = vunpack.c.l.b16 %v364
        %v1052 = vunpack.c.h.b16 %v364
        %v1053 = vunpack.c.l.b16 %v365
        %v1054 = vunpack.c.l.b16 %v366
        %v1055 = vunpack.c.h.b16 %v366
        %v1056 = vunpack.c.l.b16 %v367
        %v1057 = vunpack.c.l.b16 %v368
        %v1058 = vunpack.c.h.b16 %v368
        %v1059 = vunpack.c.l.b16 %v369
        %v1060 = vunpack.c.l.b16 %v370
        %v1061 = vunpack.c.h.b16 %v370
        %v1062 = vunpack.c.l.b16 %v371
        %v1063 = vunpack.c.l.b16 %v372
        %v1064 = vunpack.c.h.b16 %v372
        %v1065 = vunpack.c.l.b16 %v373
        %v1066 = vunpack.c.l.b16 %v374
        %v1067 = vunpack.c.h.b16 %v374
        %v1068 = vunpack.c.l.b16 %v375
        %v1069 = vunpack.c.l.b16 %v376
        %v1070 = vunpack.c.h.b16 %v376
        %v1071 = vunpack.c.l.b16 %v377
        %v1072 = vunpack.c.l.b16 %v378
        %v1073 = vunpack.c.h.b16 %v378
        %v1074 = vunpack.c.l.b16 %v379
        %v1075 = vunpack.c.l.b16 %v380
        %v1076 = vunpack.c.h.b16 %v380
        %v1077 = vunpack.c.l.b16 %v381
        %v1078 = vunpack.c.l.b16 %v382
        %v1079 = vunpack.c.h.b16 %v382
        %v1080 = vunpack.c.l.b16 %v383
        %v1081 = vunpack.c.l.b16 %v384
        %v1082 = vunpack.c.h.b16 %v384
        %v1083 = vunpack.c.l.b16 %v385
        %v1084 = vunpack.c.l.b16 %v386
        %v1085 = vunpack.c.h.b16 %v386
        %v1086 = vunpack.c.l.b16 %v387
        %v1087 = vunpack.c.l.b16 %v388
        %v1088 = vunpack.c.h.b16 %v388
        %v1089 = vunpack.c.l.b16 %v389
        %v1090 = vunpack.c.l.b16 %v390
        %v1091 = vunpack.c.h.b16 %v390
        %v1092 = vunpack.c.l.b16 %v391
        %v1093 = vunpack.c.l.b16 %v392
        %v1094 = vunpack.c.h.b16 %v392
        %v1095 = vunpack.c.l.b16 %v393
        %v1096 = vunpack.c.l.b16 %v394
        %v1097 = vunpack.c.h.b16 %v394
        %v1098 = vunpack.c.l.b16 %v395
        %v1099 = vunpack.c.l.b16 %v396
        %v1100 = vunpack.c.h.b16 %v396
        %v1101 = vunpack.c.l.b16 %v397
        %v1102 = vunpack.c.l.b16 %v398
        %v1103 = vunpack.c.h.b16 %v398
        %v1104 = vunpack.c.l.b16 %v399
        %v1105 = vunpack.c.l.b16 %v400
        %v1106 = vunpack.c.h.b16 %v400
        %v1107 = vunpack.c.l.b16 %v401
        %v1108 = vunpack.c.l.b16 %v402
        %v1109 = vunpack.c.h.b16 %v402
        %v1110 = vunpack.c.l.b16 %v403
        %v1111 = vunpack.c.l.b16 %v404
        %v1112 = vunpack.c.h.b16 %v404
        %v1113 = vunpack.c.l.b16 %v405
        %v1114 = vunpack.c.l.b16 %v406
        %v1115 = vunpack.c.h.b16 %v406
        %v1116 = vunpack.c.l.b16 %v407
        %v1117 = vunpack.c.l.b16 %v408
        %v1118 = vunpack.c.h.b16 %v408
        %v1119 = vunpack.c.l.b16 %v409
        %v1120 = vunpack.c.l.b16 %v410
        %v1121 = vunpack.c.h.b16 %v410
        %v1122 = vunpack.c.l.b16 %v411
        %v1123 = vunpack.c.l.b16 %v412
        %v1124 = vunpack.c.h.b16 %v412
        %v1125 = vunpack.c.l.b16 %v413
        %v1126 = vunpack.c.l.b16 %v414
        %v1127 = vunpack.c.h.b16 %v414
        %v1128 = vunpack.c.l.b16 %v415
        %v1129 = vunpack.c.l.b16 %v416
        %v1130 = vunpack.c.h.b16 %v416
        %v1131 = vunpack.c.l.b16 %v417
        %v1132 = vunpack.c.l.b16 %v418
        %v1133 = vunpack.c.h.b16 %v418
        %v1134 = vunpack.c.l.b16 %v419
        %v1135 = vunpack.c.l.b16 %v420
        %v1136 = vunpack.c.h.b16 %v420
        %v1137 = vunpack.c.l.b16 %v421
        %v1138 = vunpack.c.l.b16 %v422
        %v1139 = vunpack.c.h.b16 %v422
        %v1140 = vunpack.c.l.b16 %v423
        %v1141 = vunpack.c.l.b16 %v424
        %v1142 = vunpack.c.h.b16 %v424
        %v1143 = vunpack.c.l.b16 %v425
        %v1144 = vunpack.c.l.b16 %v426
        %v1145 = vunpack.c.h.b16 %v426
        %v1146 = vunpack.c.l.b16 %v427
        %v1147 = vunpack.c.l.b16 %v428
        %v1148 = vunpack.c.h.b16 %v428
        %v1149 = vunpack.c.l.b16 %v429
        %v1150 = vunpack.c.l.b16 %v430
        %v1151 = vunpack.c.h.b16 %v430
        %v1152 = vunpack.c.l.b16 %v431
        %v1153 = vunpack.c.l.b16 %v432
        %v1154 = vunpack.c.h.b16 %v432
        %v1155 = vunpack.c.l.b16 %v433
        %v1156 = vunpack.c.l.b16 %v434
        %v1157 = vunpack.c.h.b16 %v434
        %v1158 = vunpack.c.l.b16 %v435
        %v1159 = vunpack.c.l.b16 %v436
        %v1160 = vunpack.c.h.b16 %v436
        %v1161 = vunpack.c.l.b16 %v437
        %v1162 = vunpack.c.l.b16 %v438
        %v1163 = vunpack.c.h.b16 %v438
        %v1164 = vunpack.c.l.b16 %v439
        %v1165 = vunpack.c.l.b16 %v440
        %v1166 = vunpack.c.h.b16 %v440
        %v1167 = vunpack.c.l.b16 %v441
        %v1168 = vunpack.c.l.b16 %v442
        %v1169 = vunpack.c.h.b16 %v442
        %v1170 = vunpack.c.l.b16 %v443
        %v1171 = vunpack.c.l.b16 %v444
        %v1172 = vunpack.c.h.b16 %v444
        %v1173 = vunpack.c.l.b16 %v445
        %v1174 = vunpack.c.l.b16 %v446
        %v1175 = vunpack.c.h.b16 %v446
        %v1176 = vunpack.c.l.b16 %v447
        %v1177 = vunpack.c.l.b16 %v448
        %v1178 = vunpack.c.h.b16 %v448
        %v1179 = vunpack.c.l.b16 %v449
        %v1180 = vunpack.c.l.b16 %v450
        %v1181 = vunpack.c.h.b16 %v450
        %v1182 = vunpack.c.l.b16 %v451
        %v1183 = vunpack.c.l.b16 %v452
        %v1184 = vunpack.c.h.b16 %v452
        %v1185 = vunpack.c.l.b16 %v453
        %v1186 = vunpack.c.l.b16 %v454
        %v1187 = vunpack.c.h.b16 %v454
        %v1188 = vunpack.c.l.b16 %v455
        %v1189 = vunpack.c.l.b16 %v456
        %v1190 = vunpack.c.h.b16 %v456
        %v1191 = vunpack.c.l.b16 %v457
        %v1192 = vunpack.c.l.b16 %v458
        %v1193 = vunpack.c.h.b16 %v458
        %v1194 = vunpack.c.l.b16 %v459
        %v1195 = vunpack.c.l.b16 %v460
        %v1196 = vunpack.c.h.b16 %v460
        %v1197 = vunpack.c.l.b16 %v461
        %v1198 = vunpack.c.l.b16 %v462
        %v1199 = vunpack.c.h.b16 %v462
        %v1200 = vunpack.c.l.b16 %v463
        %v1201 = vunpack.c.l.b16 %v464
        %v1202 = vunpack.c.h.b16 %v464
        %v1203 = vunpack.c.l.b16 %v465
        %v1204 = vunpack.c.l.b16 %v466
        %v1205 = vunpack.c.h.b16 %v466
        %v1206 = vunpack.c.l.b16 %v467
        %v1207 = vunpack.c.l.b16 %v468
        %v1208 = vunpack.c.h.b16 %v468
        %v1209 = vunpack.c.l.b16 %v469
        %v1210 = vunpack.c.l.b16 %v470
        %v1211 = vunpack.c.h.b16 %v470
        %v1212 = vunpack.c.l.b16 %v471
        %v1213 = vunpack.c.l.b16 %v472
        %v1214 = vunpack.c.h.b16 %v472
        %v1215 = vunpack.c.l.b16 %v473
        %v1216 = vunpack.c.l.b16 %v474
        %v1217 = vunpack.c.h.b16 %v474
        %v1218 = vunpack.c.l.b16 %v475
        %v1219 = vunpack.c.l.b16 %v476
        %v1220 = vunpack.c.h.b16 %v476
        %v1221 = vunpack.c.l.b16 %v477
        %v1222 = vunpack.c.l.b16 %v478
        %v1223 = vunpack.c.h.b16 %v478
        %v1224 = vunpack.c.l.b16 %v479
        %v1225 = vunpack.c.l.b16 %v480
        %v1226 = vunpack.c.h.b16 %v480
        %v1227 = vunpack.c.l.b16 %v481
        %v1228 = vunpack.c.l.b16 %v482
        %v1229 = vunpack.c.h.b16 %v482
        %v1230 = vunpack.c.l.b16 %v483
        %v1231 = vunpack.c.l.b16 %v484
        %v1232 = vunpack.c.h.b16 %v484
        %v1233 = vunpack.c.l.b16 %v485
        %v1234 = vunpack.c.l.b16 %v486
        %v1235 = vunpack.c.h.b16 %v486
        %v1236 = vunpack.c.l.b16 %v487
        %v1237 = vunpack.c.l.b16 %v488
        %v1238 = vunpack.c.h.b16 %v488
        %v1239 = vunpack.c.l.b16 %v489
        %v1240 = vunpack.c.l.b16 %v490
        %v1241 = vunpack.c.h.b16 %v490
        %v1242 = vunpack.c.l.b16 %v491
        %v1243 = vunpack.c.l.b16 %v492
        %v1244 = vunpack.c.h.b16 %v492
        %v1245 = vunpack.c.l.b16 %v493
        %v1246 = vunpack.c.l.b16 %v494
        %v1247 = vunpack.c.h.b16 %v494
        %v1248 = vunpack.c.l.b16 %v495
        %v1249 = vunpack.c.l.b16 %v496
        %v1250 = vunpack.c.h.b16 %v496
        %v1251 = vunpack.c.l.b16 %v497
        %v1252 = vpack.c.b16 %v1015, %v1012
        %v1253 = vpack.c.b16 %v1016, %v1013
        %v1254 = vpack.c.b16 %v1017, %v1014
        %v1255 = vpack.c.b16 %v1021, %v1018
        %v1256 = vpack.c.b16 %v1022, %v1019
        %v1257 = vpack.c.b16 %v1023, %v1020
        %v1258 = vpack.c.b16 %v1027, %v1024
        %v1259 = vpack.c.b16 %v1028, %v1025
        %v1260 = vpack.c.b16 %v1029, %v1026
        %v1261 = vpack.c.b16 %v1033, %v1030
        %v1262 = vpack.c.b16 %v1034, %v1031
        %v1263 = vpack.c.b16 %v1035, %v1032
        %v1264 = vpack.c.b16 %v1039, %v1036
        %v1265 = vpack.c.b16 %v1040, %v1037
        %v1266 = vpack.c.b16 %v1041, %v1038
        %v1267 = vpack.c.b16 %v1045, %v1042
        %v1268 = vpack.c.b16 %v1046, %v1043
        %v1269 = vpack.c.b16 %v1047, %v1044
        %v1270 = vpack.c.b16 %v1051, %v1048
        %v1271 = vpack.c.b16 %v1052, %v1049
        %v1272 = vpack.c.b16 %v1053, %v1050
        %v1273 = vpack.c.b16 %v1057, %v1054
        %v1274 = vpack.c.b16 %v1058, %v1055
        %v1275 = vpack.c.b16 %v1059, %v1056
        %v1276 = vpack.c.b16 %v1063, %v1060
        %v1277 = vpack.c.b16 %v1064, %v1061
        %v1278 = vpack.c.b16 %v1065, %v1062
        %v1279 = vpack.c.b16 %v1069, %v1066
        %v1280 = vpack.c.b16 %v1070, %v1067
        %v1281 = vpack.c.b16 %v1071, %v1068
        %v1282 = vpack.c.b16 %v1075, %v1072
        %v1283 = vpack.c.b16 %v1076, %v1073
        %v1284 = vpack.c.b16 %v1077, %v1074
        %v1285 = vpack.c.b16 %v1081, %v1078
        %v1286 = vpack.c.b16 %v1082, %v1079
        %v1287 = vpack.c.b16 %v1083, %v1080
        %v1288 = vpack.c.b16 %v1087, %v1084
        %v1289 = vpack.c.b16 %v1088, %v1085
        %v1290 = vpack.c.b16 %v1089, %v1086
        %v1291 = vpack.c.b16 %v1093, %v1090
        %v1292 = vpack.c.b16 %v1094, %v1091
        %v1293 = vpack.c.b16 %v1095, %v1092
        %v1294 = vpack.c.b16 %v1099, %v1096
        %v1295 = vpack.c.b16 %v1100, %v1097
        %v1296 = vpack.c.b16 %v1101, %v1098
        %v1297 = vpack.c.b16 %v1105, %v1102
        %v1298 = vpack.c.b16 %v1106, %v1103
        %v1299 = vpack.c.b16 %v1107, %v1104
        %v1300 = vpack.c.b16 %v1111, %v1108
        %v1301 = vpack.c.b16 %v1112, %v1109
        %v1302 = vpack.c.b16 %v1113, %v1110
        %v1303 = vpack.c.b16 %v1117, %v1114
        %v1304 = vpack.c.b16 %v1118, %v1115
        %v1305 = vpack.c.b16 %v1119, %v1116
        %v1306 = vpack.c.b16 %v1123, %v1120
        %v1307 = vpack.c.b16 %v1124, %v1121
        %v1308 = vpack.c.b16 %v1125, %v1122
        %v1309 = vpack.c.b16 %v1129, %v1126
        %v1310 = vpack.c.b16 %v1130, %v1127
        %v1311 = vpack.c.b16 %v1131, %v1128
        %v1312 = vpack.c.b16 %v1135, %v1132
        %v1313 = vpack.c.b16 %v1136, %v1133
        %v1314 = vpack.c.b16 %v1137, %v1134
        %v1315 = vpack.c.b16 %v1141, %v1138
        %v1316 = vpack.c.b16 %v1142, %v1139
        %v1317 = vpack.c.b16 %v1143, %v1140
        %v1318 = vpack.c.b16 %v1147, %v1144
        %v1319 = vpack.c.b16 %v1148, %v1145
        %v1320 = vpack.c.b16 %v1149, %v1146
        %v1321 = vpack.c.b16 %v1153, %v1150
        %v1322 = vpack.c.b16 %v1154, %v1151
        %v1323 = vpack.c.b16 %v1155, %v1152
        %v1324 = vpack.c.b16 %v1159, %v1156
        %v1325 = vpack.c.b16 %v1160, %v1157
        %v1326 = vpack.c.b16 %v1161, %v1158
        %v1327 = vpack.c.b16 %v1165, %v1162
        %v1328 = vpack.c.b16 %v1166, %v1163
        %v1329 = vpack.c.b16 %v1167, %v1164
        %v1330 = vpack.c.b16 %v1171, %v1168
        %v1331 = vpack.c.b16 %v1172, %v1169
        %v1332 = vpack.c.b16 %v1173, %v1170
        %v1333 = vpack.c.b16 %v1177, %v1174
        %v1334 = vpack.c.b16 %v1178, %v1175
        %v1335 = vpack.c.b16 %v1179, %v1176
        %v1336 = vpack.c.b16 %v1183, %v1180
        %v1337 = vpack.c.b16 %v1184, %v1181
        %v1338 = vpack.c.b16 %v1185, %v1182
        %v1339 = vpack.c.b16 %v1189, %v1186
        %v1340 = vpack.c.b16 %v1190, %v1187
        %v1341 = vpack.c.b16 %v1191, %v1188
        %v1342 = vpack.c.b16 %v1195, %v1192
        %v1343 = vpack.c.b16 %v1196, %v1193
        %v1344 = vpack.c.b16 %v1197, %v1194
        %v1345 = vpack.c.b16 %v1201, %v1198
        %v1346 = vpack.c.b16 %v1202, %v1199
        %v1347 = vpack.c.b16 %v1203, %v1200
        %v1348 = vpack.c.b16 %v1207, %v1204
        %v1349 = vpack.c.b16 %v1208, %v1205
        %v1350 = vpack.c.b16 %v1209, %v1206
        %v1351 = vpack.c.b16 %v1213, %v1210
        %v1352 = vpack.c.b16 %v1214, %v1211
        %v1353 = vpack.c.b16 %v1215, %v1212
        %v1354 = vpack.c.b16 %v1219, %v1216
        %v1355 = vpack.c.b16 %v1220, %v1217
        %v1356 = vpack.c.b16 %v1221, %v1218
        %v1357 = vpack.c.b16 %v1225, %v1222
        %v1358 = vpack.c.b16 %v1226, %v1223
        %v1359 = vpack.c.b16 %v1227, %v1224
        %v1360 = vpack.c.b16 %v1231, %v1228
        %v1361 = vpack.c.b16 %v1232, %v1229
        %v1362 = vpack.c.b16 %v1233, %v1230
        %v1363 = vpack.c.b16 %v1237, %v1234
        %v1364 = vpack.c.b16 %v1238, %v1235
        %v1365 = vpack.c.b16 %v1239, %v1236
        %v1366 = vpack.c.b16 %v1243, %v1240
        %v1367 = vpack.c.b16 %v1244, %v1241
        %v1368 = vpack.c.b16 %v1245, %v1242
        %v1369 = vpack.c.b16 %v1249, %v1246
        %v1370 = vpack.c.b16 %v1250, %v1247
        %v1371 = vpack.c.b16 %v1251, %v1248
        %1492 = vmatpush.bf16.msra.mxu0 %v1273
        %1493 = vmatpush.bf16.msra.mxu0 %v1270
        %1494 = vmatpush.bf16.msra.mxu0 %v1267
        %1495 = vmatpush.bf16.msra.mxu0 %v1264
        %1496 = vmatpush.bf16.msra.mxu0 %v1261
        %1497 = vmatpush.bf16.msra.mxu0 %v1258
        %1498 = vmatpush.bf16.msra.mxu0 %v1255
        %1499 = vmatpush.bf16.msra.mxu0 %v1252
        %1500 = vmatmul.bf16.gmra.mxu0 %v560
        %v1501 = vpop.f32.mrf.mxu0
        %v1502 = vadd.f32 0.0, %v1501
        %v1503 = vpop.f32.mrf.mxu0
        %v1504 = vadd.f32 0.0, %v1503
        %1505 = vmatmul.bf16.gmra.mxu0 %v561
        %v1506 = vpop.f32.mrf.mxu0
        %v1507 = vadd.f32 0.0, %v1506
        %v1508 = vpop.f32.mrf.mxu0
        %v1509 = vadd.f32 0.0, %v1508
        %1510 = vmatmul.bf16.gmra.mxu0 %v562
        %v1511 = vpop.f32.mrf.mxu0
        %v1512 = vadd.f32 0.0, %v1511
        %v1513 = vpop.f32.mrf.mxu0
        %v1514 = vadd.f32 0.0, %v1513
        %1515 = vmatmul.bf16.gmra.mxu0 %v563
        %v1516 = vpop.f32.mrf.mxu0
        %v1517 = vadd.f32 0.0, %v1516
        %v1518 = vpop.f32.mrf.mxu0
        %v1519 = vadd.f32 0.0, %v1518
        %1520 = vmatmul.bf16.gmra.mxu0 %v564
        %v1521 = vpop.f32.mrf.mxu0
        %v1522 = vadd.f32 0.0, %v1521
        %v1523 = vpop.f32.mrf.mxu0
        %v1524 = vadd.f32 0.0, %v1523
        %1525 = vmatmul.bf16.gmra.mxu0 %v565
        %v1526 = vpop.f32.mrf.mxu0
        %v1527 = vadd.f32 0.0, %v1526
        %v1528 = vpop.f32.mrf.mxu0
        %v1529 = vadd.f32 0.0, %v1528
        %1530 = vmatmul.bf16.gmra.mxu0 %v566
        %v1531 = vpop.f32.mrf.mxu0
        %v1532 = vadd.f32 0.0, %v1531
        %v1533 = vpop.f32.mrf.mxu0
        %v1534 = vadd.f32 0.0, %v1533
        %1535 = vmatmul.bf16.gmra.mxu0 %v567
        %v1536 = vpop.f32.mrf.mxu0
        %v1537 = vadd.f32 0.0, %v1536
        %v1538 = vpop.f32.mrf.mxu0
        %v1539 = vadd.f32 0.0, %v1538
        %1540 = vdwg.mxu0
        %1541 = vmatpush.bf16.msra.mxu0 %v1297
        %1542 = vmatpush.bf16.msra.mxu0 %v1294
        %1543 = vmatpush.bf16.msra.mxu0 %v1291
        %1544 = vmatpush.bf16.msra.mxu0 %v1288
        %1545 = vmatpush.bf16.msra.mxu0 %v1285
        %1546 = vmatpush.bf16.msra.mxu0 %v1282
        %1547 = vmatpush.bf16.msra.mxu0 %v1279
        %1548 = vmatpush.bf16.msra.mxu0 %v1276
        %1549 = vmatmul.bf16.gmra.mxu0 %v612
        %v1550 = vpop.f32.mrf.mxu0
        %v1551 = vadd.f32 %v1502, %v1550
        %v1552 = vpop.f32.mrf.mxu0
        %v1553 = vadd.f32 %v1504, %v1552
        %1554 = vmatmul.bf16.gmra.mxu0 %v624
        %v1555 = vpop.f32.mrf.mxu0
        %v1556 = vadd.f32 %v1507, %v1555
        %v1557 = vpop.f32.mrf.mxu0
        %v1558 = vadd.f32 %v1509, %v1557
        %1559 = vmatmul.bf16.gmra.mxu0 %v636
        %v1560 = vpop.f32.mrf.mxu0
        %v1561 = vadd.f32 %v1512, %v1560
        %v1562 = vpop.f32.mrf.mxu0
        %v1563 = vadd.f32 %v1514, %v1562
        %1564 = vmatmul.bf16.gmra.mxu0 %v648
        %v1565 = vpop.f32.mrf.mxu0
        %v1566 = vadd.f32 %v1517, %v1565
        %v1567 = vpop.f32.mrf.mxu0
        %v1568 = vadd.f32 %v1519, %v1567
        %1569 = vmatmul.bf16.gmra.mxu0 %v660
        %v1570 = vpop.f32.mrf.mxu0
        %v1571 = vadd.f32 %v1522, %v1570
        %v1572 = vpop.f32.mrf.mxu0
        %v1573 = vadd.f32 %v1524, %v1572
        %1574 = vmatmul.bf16.gmra.mxu0 %v672
        %v1575 = vpop.f32.mrf.mxu0
        %v1576 = vadd.f32 %v1527, %v1575
        %v1577 = vpop.f32.mrf.mxu0
        %v1578 = vadd.f32 %v1529, %v1577
        %1579 = vmatmul.bf16.gmra.mxu0 %v684
        %v1580 = vpop.f32.mrf.mxu0
        %v1581 = vadd.f32 %v1532, %v1580
        %v1582 = vpop.f32.mrf.mxu0
        %v1583 = vadd.f32 %v1534, %v1582
        %1584 = vmatmul.bf16.gmra.mxu0 %v696
        %v1585 = vpop.f32.mrf.mxu0
        %v1586 = vadd.f32 %v1537, %v1585
        %v1587 = vpop.f32.mrf.mxu0
        %v1588 = vadd.f32 %v1539, %v1587
        %1589 = vdwg.mxu0
        %1590 = vmatpush.bf16.msra.mxu0 %v1321
        %1591 = vmatpush.bf16.msra.mxu0 %v1318
        %1592 = vmatpush.bf16.msra.mxu0 %v1315
        %1593 = vmatpush.bf16.msra.mxu0 %v1312
        %1594 = vmatpush.bf16.msra.mxu0 %v1309
        %1595 = vmatpush.bf16.msra.mxu0 %v1306
        %1596 = vmatpush.bf16.msra.mxu0 %v1303
        %1597 = vmatpush.bf16.msra.mxu0 %v1300
        %1598 = vmatmul.bf16.gmra.mxu0 %v708
        %v1599 = vpop.f32.mrf.mxu0
        %v1600 = vadd.f32 %v1551, %v1599
        %v1601 = vpop.f32.mrf.mxu0
        %v1602 = vadd.f32 %v1553, %v1601
        %1603 = vmatmul.bf16.gmra.mxu0 %v711
        %v1604 = vpop.f32.mrf.mxu0
        %v1605 = vadd.f32 %v1556, %v1604
        %v1606 = vpop.f32.mrf.mxu0
        %v1607 = vadd.f32 %v1558, %v1606
        %1608 = vmatmul.bf16.gmra.mxu0 %v714
        %v1609 = vpop.f32.mrf.mxu0
        %v1610 = vadd.f32 %v1561, %v1609
        %v1611 = vpop.f32.mrf.mxu0
        %v1612 = vadd.f32 %v1563, %v1611
        %1613 = vmatmul.bf16.gmra.mxu0 %v717
        %v1614 = vpop.f32.mrf.mxu0
        %v1615 = vadd.f32 %v1566, %v1614
        %v1616 = vpop.f32.mrf.mxu0
        %v1617 = vadd.f32 %v1568, %v1616
        %1618 = vmatmul.bf16.gmra.mxu0 %v720
        %v1619 = vpop.f32.mrf.mxu0
        %v1620 = vadd.f32 %v1571, %v1619
        %v1621 = vpop.f32.mrf.mxu0
        %v1622 = vadd.f32 %v1573, %v1621
        %1623 = vmatmul.bf16.gmra.mxu0 %v723
        %v1624 = vpop.f32.mrf.mxu0
        %v1625 = vadd.f32 %v1576, %v1624
        %v1626 = vpop.f32.mrf.mxu0
        %v1627 = vadd.f32 %v1578, %v1626
        %1628 = vmatmul.bf16.gmra.mxu0 %v726
        %v1629 = vpop.f32.mrf.mxu0
        %v1630 = vadd.f32 %v1581, %v1629
        %v1631 = vpop.f32.mrf.mxu0
        %v1632 = vadd.f32 %v1583, %v1631
        %1633 = vmatmul.bf16.gmra.mxu0 %v729
        %v1634 = vpop.f32.mrf.mxu0
        %v1635 = vadd.f32 %v1586, %v1634
        %v1636 = vpop.f32.mrf.mxu0
        %v1637 = vadd.f32 %v1588, %v1636
        %1638 = vdwg.mxu0
        %1639 = vmatpush.bf16.msra.mxu0 %v1345
        %1640 = vmatpush.bf16.msra.mxu0 %v1342
        %1641 = vmatpush.bf16.msra.mxu0 %v1339
        %1642 = vmatpush.bf16.msra.mxu0 %v1336
        %1643 = vmatpush.bf16.msra.mxu0 %v1333
        %1644 = vmatpush.bf16.msra.mxu0 %v1330
        %1645 = vmatpush.bf16.msra.mxu0 %v1327
        %1646 = vmatpush.bf16.msra.mxu0 %v1324
        %1647 = vmatmul.bf16.gmra.mxu0 %v747
        %v1648 = vpop.f32.mrf.mxu0
        %v1649 = vadd.f32 %v1600, %v1648
        %v1650 = vpop.f32.mrf.mxu0
        %v1651 = vadd.f32 %v1602, %v1650
        %1652 = vmatmul.bf16.gmra.mxu0 %v756
        %v1653 = vpop.f32.mrf.mxu0
        %v1654 = vadd.f32 %v1605, %v1653
        %v1655 = vpop.f32.mrf.mxu0
        %v1656 = vadd.f32 %v1607, %v1655
        %1657 = vmatmul.bf16.gmra.mxu0 %v765
        %v1658 = vpop.f32.mrf.mxu0
        %v1659 = vadd.f32 %v1610, %v1658
        %v1660 = vpop.f32.mrf.mxu0
        %v1661 = vadd.f32 %v1612, %v1660
        %1662 = vmatmul.bf16.gmra.mxu0 %v774
        %v1663 = vpop.f32.mrf.mxu0
        %v1664 = vadd.f32 %v1615, %v1663
        %v1665 = vpop.f32.mrf.mxu0
        %v1666 = vadd.f32 %v1617, %v1665
        %1667 = vmatmul.bf16.gmra.mxu0 %v783
        %v1668 = vpop.f32.mrf.mxu0
        %v1669 = vadd.f32 %v1620, %v1668
        %v1670 = vpop.f32.mrf.mxu0
        %v1671 = vadd.f32 %v1622, %v1670
        %1672 = vmatmul.bf16.gmra.mxu0 %v792
        %v1673 = vpop.f32.mrf.mxu0
        %v1674 = vadd.f32 %v1625, %v1673
        %v1675 = vpop.f32.mrf.mxu0
        %v1676 = vadd.f32 %v1627, %v1675
        %1677 = vmatmul.bf16.gmra.mxu0 %v801
        %v1678 = vpop.f32.mrf.mxu0
        %v1679 = vadd.f32 %v1630, %v1678
        %v1680 = vpop.f32.mrf.mxu0
        %v1681 = vadd.f32 %v1632, %v1680
        %1682 = vmatmul.bf16.gmra.mxu0 %v810
        %v1683 = vpop.f32.mrf.mxu0
        %v1684 = vadd.f32 %v1635, %v1683
        %v1685 = vpop.f32.mrf.mxu0
        %v1686 = vadd.f32 %v1637, %v1685
        %1687 = vdwg.mxu0
        %1688 = vmatpush.bf16.msra.mxu0 %v1369
        %1689 = vmatpush.bf16.msra.mxu0 %v1366
        %1690 = vmatpush.bf16.msra.mxu0 %v1363
        %1691 = vmatpush.bf16.msra.mxu0 %v1360
        %1692 = vmatpush.bf16.msra.mxu0 %v1357
        %1693 = vmatpush.bf16.msra.mxu0 %v1354
        %1694 = vmatpush.bf16.msra.mxu0 %v1351
        %1695 = vmatpush.bf16.msra.mxu0 %v1348
        %1696 = vmatmul.bf16.gmra.mxu0 %v822
        %v1697 = vpop.f32.mrf.mxu0
        %v1698 = vadd.f32 %v1649, %v1697
        %v1699 = vpop.f32.mrf.mxu0
        %v1700 = vadd.f32 %v1651, %v1699
        %1701 = vmatmul.bf16.gmra.mxu0 %v825
        %v1702 = vpop.f32.mrf.mxu0
        %v1703 = vadd.f32 %v1654, %v1702
        %v1704 = vpop.f32.mrf.mxu0
        %v1705 = vadd.f32 %v1656, %v1704
        %1706 = vmatmul.bf16.gmra.mxu0 %v828
        %v1707 = vpop.f32.mrf.mxu0
        %v1708 = vadd.f32 %v1659, %v1707
        %v1709 = vpop.f32.mrf.mxu0
        %v1710 = vadd.f32 %v1661, %v1709
        %1711 = vmatmul.bf16.gmra.mxu0 %v831
        %v1712 = vpop.f32.mrf.mxu0
        %v1713 = vadd.f32 %v1664, %v1712
        %v1714 = vpop.f32.mrf.mxu0
        %v1715 = vadd.f32 %v1666, %v1714
        %1716 = vmatmul.bf16.gmra.mxu0 %v834
        %v1717 = vpop.f32.mrf.mxu0
        %v1718 = vadd.f32 %v1669, %v1717
        %v1719 = vpop.f32.mrf.mxu0
        %v1720 = vadd.f32 %v1671, %v1719
        %1721 = vmatmul.bf16.gmra.mxu0 %v837
        %v1722 = vpop.f32.mrf.mxu0
        %v1723 = vadd.f32 %v1674, %v1722
        %v1724 = vpop.f32.mrf.mxu0
        %v1725 = vadd.f32 %v1676, %v1724
        %1726 = vmatmul.bf16.gmra.mxu0 %v840
        %v1727 = vpop.f32.mrf.mxu0
        %v1728 = vadd.f32 %v1679, %v1727
        %v1729 = vpop.f32.mrf.mxu0
        %v1730 = vadd.f32 %v1681, %v1729
        %1731 = vmatmul.bf16.gmra.mxu0 %v843
        %v1732 = vpop.f32.mrf.mxu0
        %v1733 = vadd.f32 %v1684, %v1732
        %v1734 = vpop.f32.mrf.mxu0
        %v1735 = vadd.f32 %v1686, %v1734
        %1736 = vdwg.mxu0
        %1737 = vmatpush.bf16.msra.mxu0 %v1274
        %1738 = vmatpush.bf16.msra.mxu0 %v1271
        %1739 = vmatpush.bf16.msra.mxu0 %v1268
        %1740 = vmatpush.bf16.msra.mxu0 %v1265
        %1741 = vmatpush.bf16.msra.mxu0 %v1262
        %1742 = vmatpush.bf16.msra.mxu0 %v1259
        %1743 = vmatpush.bf16.msra.mxu0 %v1256
        %1744 = vmatpush.bf16.msra.mxu0 %v1253
        %1745 = vmatmul.bf16.gmra.mxu0 %v560
        %v1746 = vpop.f32.mrf.mxu0
        %v1747 = vadd.f32 0.0, %v1746
        %v1748 = vpop.f32.mrf.mxu0
        %v1749 = vadd.f32 0.0, %v1748
        %1750 = vmatmul.bf16.gmra.mxu0 %v561
        %v1751 = vpop.f32.mrf.mxu0
        %v1752 = vadd.f32 0.0, %v1751
        %v1753 = vpop.f32.mrf.mxu0
        %v1754 = vadd.f32 0.0, %v1753
        %1755 = vmatmul.bf16.gmra.mxu0 %v562
        %v1756 = vpop.f32.mrf.mxu0
        %v1757 = vadd.f32 0.0, %v1756
        %v1758 = vpop.f32.mrf.mxu0
        %v1759 = vadd.f32 0.0, %v1758
        %1760 = vmatmul.bf16.gmra.mxu0 %v563
        %v1761 = vpop.f32.mrf.mxu0
        %v1762 = vadd.f32 0.0, %v1761
        %v1763 = vpop.f32.mrf.mxu0
        %v1764 = vadd.f32 0.0, %v1763
        %1765 = vmatmul.bf16.gmra.mxu0 %v564
        %v1766 = vpop.f32.mrf.mxu0
        %v1767 = vadd.f32 0.0, %v1766
        %v1768 = vpop.f32.mrf.mxu0
        %v1769 = vadd.f32 0.0, %v1768
        %1770 = vmatmul.bf16.gmra.mxu0 %v565
        %v1771 = vpop.f32.mrf.mxu0
        %v1772 = vadd.f32 0.0, %v1771
        %v1773 = vpop.f32.mrf.mxu0
        %v1774 = vadd.f32 0.0, %v1773
        %1775 = vmatmul.bf16.gmra.mxu0 %v566
        %v1776 = vpop.f32.mrf.mxu0
        %v1777 = vadd.f32 0.0, %v1776
        %v1778 = vpop.f32.mrf.mxu0
        %v1779 = vadd.f32 0.0, %v1778
        %1780 = vmatmul.bf16.gmra.mxu0 %v567
        %v1781 = vpop.f32.mrf.mxu0
        %v1782 = vadd.f32 0.0, %v1781
        %v1783 = vpop.f32.mrf.mxu0
        %v1784 = vadd.f32 0.0, %v1783
        %1785 = vdwg.mxu0
        %1786 = vmatpush.bf16.msra.mxu0 %v1298
        %1787 = vmatpush.bf16.msra.mxu0 %v1295
        %1788 = vmatpush.bf16.msra.mxu0 %v1292
        %1789 = vmatpush.bf16.msra.mxu0 %v1289
        %1790 = vmatpush.bf16.msra.mxu0 %v1286
        %1791 = vmatpush.bf16.msra.mxu0 %v1283
        %1792 = vmatpush.bf16.msra.mxu0 %v1280
        %1793 = vmatpush.bf16.msra.mxu0 %v1277
        %1794 = vmatmul.bf16.gmra.mxu0 %v612
        %v1795 = vpop.f32.mrf.mxu0
        %v1796 = vadd.f32 %v1747, %v1795
        %v1797 = vpop.f32.mrf.mxu0
        %v1798 = vadd.f32 %v1749, %v1797
        %1799 = vmatmul.bf16.gmra.mxu0 %v624
        %v1800 = vpop.f32.mrf.mxu0
        %v1801 = vadd.f32 %v1752, %v1800
        %v1802 = vpop.f32.mrf.mxu0
        %v1803 = vadd.f32 %v1754, %v1802
        %1804 = vmatmul.bf16.gmra.mxu0 %v636
        %v1805 = vpop.f32.mrf.mxu0
        %v1806 = vadd.f32 %v1757, %v1805
        %v1807 = vpop.f32.mrf.mxu0
        %v1808 = vadd.f32 %v1759, %v1807
        %1809 = vmatmul.bf16.gmra.mxu0 %v648
        %v1810 = vpop.f32.mrf.mxu0
        %v1811 = vadd.f32 %v1762, %v1810
        %v1812 = vpop.f32.mrf.mxu0
        %v1813 = vadd.f32 %v1764, %v1812
        %1814 = vmatmul.bf16.gmra.mxu0 %v660
        %v1815 = vpop.f32.mrf.mxu0
        %v1816 = vadd.f32 %v1767, %v1815
        %v1817 = vpop.f32.mrf.mxu0
        %v1818 = vadd.f32 %v1769, %v1817
        %1819 = vmatmul.bf16.gmra.mxu0 %v672
        %v1820 = vpop.f32.mrf.mxu0
        %v1821 = vadd.f32 %v1772, %v1820
        %v1822 = vpop.f32.mrf.mxu0
        %v1823 = vadd.f32 %v1774, %v1822
        %1824 = vmatmul.bf16.gmra.mxu0 %v684
        %v1825 = vpop.f32.mrf.mxu0
        %v1826 = vadd.f32 %v1777, %v1825
        %v1827 = vpop.f32.mrf.mxu0
        %v1828 = vadd.f32 %v1779, %v1827
        %1829 = vmatmul.bf16.gmra.mxu0 %v696
        %v1830 = vpop.f32.mrf.mxu0
        %v1831 = vadd.f32 %v1782, %v1830
        %v1832 = vpop.f32.mrf.mxu0
        %v1833 = vadd.f32 %v1784, %v1832
        %1834 = vdwg.mxu0
        %1835 = vmatpush.bf16.msra.mxu0 %v1322
        %1836 = vmatpush.bf16.msra.mxu0 %v1319
        %1837 = vmatpush.bf16.msra.mxu0 %v1316
        %1838 = vmatpush.bf16.msra.mxu0 %v1313
        %1839 = vmatpush.bf16.msra.mxu0 %v1310
        %1840 = vmatpush.bf16.msra.mxu0 %v1307
        %1841 = vmatpush.bf16.msra.mxu0 %v1304
        %1842 = vmatpush.bf16.msra.mxu0 %v1301
        %1843 = vmatmul.bf16.gmra.mxu0 %v708
        %v1844 = vpop.f32.mrf.mxu0
        %v1845 = vadd.f32 %v1796, %v1844
        %v1846 = vpop.f32.mrf.mxu0
        %v1847 = vadd.f32 %v1798, %v1846
        %1848 = vmatmul.bf16.gmra.mxu0 %v711
        %v1849 = vpop.f32.mrf.mxu0
        %v1850 = vadd.f32 %v1801, %v1849
        %v1851 = vpop.f32.mrf.mxu0
        %v1852 = vadd.f32 %v1803, %v1851
        %1853 = vmatmul.bf16.gmra.mxu0 %v714
        %v1854 = vpop.f32.mrf.mxu0
        %v1855 = vadd.f32 %v1806, %v1854
        %v1856 = vpop.f32.mrf.mxu0
        %v1857 = vadd.f32 %v1808, %v1856
        %1858 = vmatmul.bf16.gmra.mxu0 %v717
        %v1859 = vpop.f32.mrf.mxu0
        %v1860 = vadd.f32 %v1811, %v1859
        %v1861 = vpop.f32.mrf.mxu0
        %v1862 = vadd.f32 %v1813, %v1861
        %1863 = vmatmul.bf16.gmra.mxu0 %v720
        %v1864 = vpop.f32.mrf.mxu0
        %v1865 = vadd.f32 %v1816, %v1864
        %v1866 = vpop.f32.mrf.mxu0
        %v1867 = vadd.f32 %v1818, %v1866
        %1868 = vmatmul.bf16.gmra.mxu0 %v723
        %v1869 = vpop.f32.mrf.mxu0
        %v1870 = vadd.f32 %v1821, %v1869
        %v1871 = vpop.f32.mrf.mxu0
        %v1872 = vadd.f32 %v1823, %v1871
        %1873 = vmatmul.bf16.gmra.mxu0 %v726
        %v1874 = vpop.f32.mrf.mxu0
        %v1875 = vadd.f32 %v1826, %v1874
        %v1876 = vpop.f32.mrf.mxu0
        %v1877 = vadd.f32 %v1828, %v1876
        %1878 = vmatmul.bf16.gmra.mxu0 %v729
        %v1879 = vpop.f32.mrf.mxu0
        %v1880 = vadd.f32 %v1831, %v1879
        %v1881 = vpop.f32.mrf.mxu0
        %v1882 = vadd.f32 %v1833, %v1881
        %1883 = vdwg.mxu0
        %1884 = vmatpush.bf16.msra.mxu0 %v1346
        %1885 = vmatpush.bf16.msra.mxu0 %v1343
        %1886 = vmatpush.bf16.msra.mxu0 %v1340
        %1887 = vmatpush.bf16.msra.mxu0 %v1337
        %1888 = vmatpush.bf16.msra.mxu0 %v1334
        %1889 = vmatpush.bf16.msra.mxu0 %v1331
        %1890 = vmatpush.bf16.msra.mxu0 %v1328
        %1891 = vmatpush.bf16.msra.mxu0 %v1325
        %1892 = vmatmul.bf16.gmra.mxu0 %v747
        %v1893 = vpop.f32.mrf.mxu0
        %v1894 = vadd.f32 %v1845, %v1893
        %v1895 = vpop.f32.mrf.mxu0
        %v1896 = vadd.f32 %v1847, %v1895
        %1897 = vmatmul.bf16.gmra.mxu0 %v756
        %v1898 = vpop.f32.mrf.mxu0
        %v1899 = vadd.f32 %v1850, %v1898
        %v1900 = vpop.f32.mrf.mxu0
        %v1901 = vadd.f32 %v1852, %v1900
        %1902 = vmatmul.bf16.gmra.mxu0 %v765
        %v1903 = vpop.f32.mrf.mxu0
        %v1904 = vadd.f32 %v1855, %v1903
        %v1905 = vpop.f32.mrf.mxu0
        %v1906 = vadd.f32 %v1857, %v1905
        %1907 = vmatmul.bf16.gmra.mxu0 %v774
        %v1908 = vpop.f32.mrf.mxu0
        %v1909 = vadd.f32 %v1860, %v1908
        %v1910 = vpop.f32.mrf.mxu0
        %v1911 = vadd.f32 %v1862, %v1910
        %1912 = vmatmul.bf16.gmra.mxu0 %v783
        %v1913 = vpop.f32.mrf.mxu0
        %v1914 = vadd.f32 %v1865, %v1913
        %v1915 = vpop.f32.mrf.mxu0
        %v1916 = vadd.f32 %v1867, %v1915
        %1917 = vmatmul.bf16.gmra.mxu0 %v792
        %v1918 = vpop.f32.mrf.mxu0
        %v1919 = vadd.f32 %v1870, %v1918
        %v1920 = vpop.f32.mrf.mxu0
        %v1921 = vadd.f32 %v1872, %v1920
        %1922 = vmatmul.bf16.gmra.mxu0 %v801
        %v1923 = vpop.f32.mrf.mxu0
        %v1924 = vadd.f32 %v1875, %v1923
        %v1925 = vpop.f32.mrf.mxu0
        %v1926 = vadd.f32 %v1877, %v1925
        %1927 = vmatmul.bf16.gmra.mxu0 %v810
        %v1928 = vpop.f32.mrf.mxu0
        %v1929 = vadd.f32 %v1880, %v1928
        %v1930 = vpop.f32.mrf.mxu0
        %v1931 = vadd.f32 %v1882, %v1930
        %1932 = vdwg.mxu0
        %1933 = vmatpush.bf16.msra.mxu0 %v1370
        %1934 = vmatpush.bf16.msra.mxu0 %v1367
        %1935 = vmatpush.bf16.msra.mxu0 %v1364
        %1936 = vmatpush.bf16.msra.mxu0 %v1361
        %1937 = vmatpush.bf16.msra.mxu0 %v1358
        %1938 = vmatpush.bf16.msra.mxu0 %v1355
        %1939 = vmatpush.bf16.msra.mxu0 %v1352
        %1940 = vmatpush.bf16.msra.mxu0 %v1349
        %1941 = vmatmul.bf16.gmra.mxu0 %v822
        %v1942 = vpop.f32.mrf.mxu0
        %v1943 = vadd.f32 %v1894, %v1942
        %v1944 = vpop.f32.mrf.mxu0
        %v1945 = vadd.f32 %v1896, %v1944
        %1946 = vmatmul.bf16.gmra.mxu0 %v825
        %v1947 = vpop.f32.mrf.mxu0
        %v1948 = vadd.f32 %v1899, %v1947
        %v1949 = vpop.f32.mrf.mxu0
        %v1950 = vadd.f32 %v1901, %v1949
        %1951 = vmatmul.bf16.gmra.mxu0 %v828
        %v1952 = vpop.f32.mrf.mxu0
        %v1953 = vadd.f32 %v1904, %v1952
        %v1954 = vpop.f32.mrf.mxu0
        %v1955 = vadd.f32 %v1906, %v1954
        %1956 = vmatmul.bf16.gmra.mxu0 %v831
        %v1957 = vpop.f32.mrf.mxu0
        %v1958 = vadd.f32 %v1909, %v1957
        %v1959 = vpop.f32.mrf.mxu0
        %v1960 = vadd.f32 %v1911, %v1959
        %1961 = vmatmul.bf16.gmra.mxu0 %v834
        %v1962 = vpop.f32.mrf.mxu0
        %v1963 = vadd.f32 %v1914, %v1962
        %v1964 = vpop.f32.mrf.mxu0
        %v1965 = vadd.f32 %v1916, %v1964
        %1966 = vmatmul.bf16.gmra.mxu0 %v837
        %v1967 = vpop.f32.mrf.mxu0
        %v1968 = vadd.f32 %v1919, %v1967
        %v1969 = vpop.f32.mrf.mxu0
        %v1970 = vadd.f32 %v1921, %v1969
        %1971 = vmatmul.bf16.gmra.mxu0 %v840
        %v1972 = vpop.f32.mrf.mxu0
        %v1973 = vadd.f32 %v1924, %v1972
        %v1974 = vpop.f32.mrf.mxu0
        %v1975 = vadd.f32 %v1926, %v1974
        %1976 = vmatmul.bf16.gmra.mxu0 %v843
        %v1977 = vpop.f32.mrf.mxu0
        %v1978 = vadd.f32 %v1929, %v1977
        %v1979 = vpop.f32.mrf.mxu0
        %v1980 = vadd.f32 %v1931, %v1979
        %1981 = vdwg.mxu0
        %1982 = vmatpush.bf16.msra.mxu0 %v1275
        %1983 = vmatpush.bf16.msra.mxu0 %v1272
        %1984 = vmatpush.bf16.msra.mxu0 %v1269
        %1985 = vmatpush.bf16.msra.mxu0 %v1266
        %1986 = vmatpush.bf16.msra.mxu0 %v1263
        %1987 = vmatpush.bf16.msra.mxu0 %v1260
        %1988 = vmatpush.bf16.msra.mxu0 %v1257
        %1989 = vmatpush.bf16.msra.mxu0 %v1254
        %1990 = vmatmul.bf16.gmra.mxu0 %v560
        %v1991 = vpop.f32.mrf.mxu0
        %v1992 = vadd.f32 0.0, %v1991
        %v1993 = vpop.f32.mrf.mxu0
        %v1994 = vadd.f32 0.0, %v1993
        %1995 = vmatmul.bf16.gmra.mxu0 %v561
        %v1996 = vpop.f32.mrf.mxu0
        %v1997 = vadd.f32 0.0, %v1996
        %v1998 = vpop.f32.mrf.mxu0
        %v1999 = vadd.f32 0.0, %v1998
        %2000 = vmatmul.bf16.gmra.mxu0 %v562
        %v2001 = vpop.f32.mrf.mxu0
        %v2002 = vadd.f32 0.0, %v2001
        %v2003 = vpop.f32.mrf.mxu0
        %v2004 = vadd.f32 0.0, %v2003
        %2005 = vmatmul.bf16.gmra.mxu0 %v563
        %v2006 = vpop.f32.mrf.mxu0
        %v2007 = vadd.f32 0.0, %v2006
        %v2008 = vpop.f32.mrf.mxu0
        %v2009 = vadd.f32 0.0, %v2008
        %2010 = vmatmul.bf16.gmra.mxu0 %v564
        %v2011 = vpop.f32.mrf.mxu0
        %v2012 = vadd.f32 0.0, %v2011
        %v2013 = vpop.f32.mrf.mxu0
        %v2014 = vadd.f32 0.0, %v2013
        %2015 = vmatmul.bf16.gmra.mxu0 %v565
        %v2016 = vpop.f32.mrf.mxu0
        %v2017 = vadd.f32 0.0, %v2016
        %v2018 = vpop.f32.mrf.mxu0
        %v2019 = vadd.f32 0.0, %v2018
        %2020 = vmatmul.bf16.gmra.mxu0 %v566
        %v2021 = vpop.f32.mrf.mxu0
        %v2022 = vadd.f32 0.0, %v2021
        %v2023 = vpop.f32.mrf.mxu0
        %v2024 = vadd.f32 0.0, %v2023
        %2025 = vmatmul.bf16.gmra.mxu0 %v567
        %v2026 = vpop.f32.mrf.mxu0
        %v2027 = vadd.f32 0.0, %v2026
        %v2028 = vpop.f32.mrf.mxu0
        %v2029 = vadd.f32 0.0, %v2028
        %2030 = vdwg.mxu0
        %2031 = vmatpush.bf16.msra.mxu0 %v1299
        %2032 = vmatpush.bf16.msra.mxu0 %v1296
        %2033 = vmatpush.bf16.msra.mxu0 %v1293
        %2034 = vmatpush.bf16.msra.mxu0 %v1290
        %2035 = vmatpush.bf16.msra.mxu0 %v1287
        %2036 = vmatpush.bf16.msra.mxu0 %v1284
        %2037 = vmatpush.bf16.msra.mxu0 %v1281
        %2038 = vmatpush.bf16.msra.mxu0 %v1278
        %2039 = vmatmul.bf16.gmra.mxu0 %v612
        %v2040 = vpop.f32.mrf.mxu0
        %v2041 = vadd.f32 %v1992, %v2040
        %v2042 = vpop.f32.mrf.mxu0
        %v2043 = vadd.f32 %v1994, %v2042
        %2044 = vmatmul.bf16.gmra.mxu0 %v624
        %v2045 = vpop.f32.mrf.mxu0
        %v2046 = vadd.f32 %v1997, %v2045
        %v2047 = vpop.f32.mrf.mxu0
        %v2048 = vadd.f32 %v1999, %v2047
        %2049 = vmatmul.bf16.gmra.mxu0 %v636
        %v2050 = vpop.f32.mrf.mxu0
        %v2051 = vadd.f32 %v2002, %v2050
        %v2052 = vpop.f32.mrf.mxu0
        %v2053 = vadd.f32 %v2004, %v2052
        %2054 = vmatmul.bf16.gmra.mxu0 %v648
        %v2055 = vpop.f32.mrf.mxu0
        %v2056 = vadd.f32 %v2007, %v2055
        %v2057 = vpop.f32.mrf.mxu0
        %v2058 = vadd.f32 %v2009, %v2057
        %2059 = vmatmul.bf16.gmra.mxu0 %v660
        %v2060 = vpop.f32.mrf.mxu0
        %v2061 = vadd.f32 %v2012, %v2060
        %v2062 = vpop.f32.mrf.mxu0
        %v2063 = vadd.f32 %v2014, %v2062
        %2064 = vmatmul.bf16.gmra.mxu0 %v672
        %v2065 = vpop.f32.mrf.mxu0
        %v2066 = vadd.f32 %v2017, %v2065
        %v2067 = vpop.f32.mrf.mxu0
        %v2068 = vadd.f32 %v2019, %v2067
        %2069 = vmatmul.bf16.gmra.mxu0 %v684
        %v2070 = vpop.f32.mrf.mxu0
        %v2071 = vadd.f32 %v2022, %v2070
        %v2072 = vpop.f32.mrf.mxu0
        %v2073 = vadd.f32 %v2024, %v2072
        %2074 = vmatmul.bf16.gmra.mxu0 %v696
        %v2075 = vpop.f32.mrf.mxu0
        %v2076 = vadd.f32 %v2027, %v2075
        %v2077 = vpop.f32.mrf.mxu0
        %v2078 = vadd.f32 %v2029, %v2077
        %2079 = vdwg.mxu0
        %2080 = vmatpush.bf16.msra.mxu0 %v1323
        %2081 = vmatpush.bf16.msra.mxu0 %v1320
        %2082 = vmatpush.bf16.msra.mxu0 %v1317
        %2083 = vmatpush.bf16.msra.mxu0 %v1314
        %2084 = vmatpush.bf16.msra.mxu0 %v1311
        %2085 = vmatpush.bf16.msra.mxu0 %v1308
        %2086 = vmatpush.bf16.msra.mxu0 %v1305
        %2087 = vmatpush.bf16.msra.mxu0 %v1302
        %2088 = vmatmul.bf16.gmra.mxu0 %v708
        %v2089 = vpop.f32.mrf.mxu0
        %v2090 = vadd.f32 %v2041, %v2089
        %v2091 = vpop.f32.mrf.mxu0
        %v2092 = vadd.f32 %v2043, %v2091
        %2093 = vmatmul.bf16.gmra.mxu0 %v711
        %v2094 = vpop.f32.mrf.mxu0
        %v2095 = vadd.f32 %v2046, %v2094
        %v2096 = vpop.f32.mrf.mxu0
        %v2097 = vadd.f32 %v2048, %v2096
        %2098 = vmatmul.bf16.gmra.mxu0 %v714
        %v2099 = vpop.f32.mrf.mxu0
        %v2100 = vadd.f32 %v2051, %v2099
        %v2101 = vpop.f32.mrf.mxu0
        %v2102 = vadd.f32 %v2053, %v2101
        %2103 = vmatmul.bf16.gmra.mxu0 %v717
        %v2104 = vpop.f32.mrf.mxu0
        %v2105 = vadd.f32 %v2056, %v2104
        %v2106 = vpop.f32.mrf.mxu0
        %v2107 = vadd.f32 %v2058, %v2106
        %2108 = vmatmul.bf16.gmra.mxu0 %v720
        %v2109 = vpop.f32.mrf.mxu0
        %v2110 = vadd.f32 %v2061, %v2109
        %v2111 = vpop.f32.mrf.mxu0
        %v2112 = vadd.f32 %v2063, %v2111
        %2113 = vmatmul.bf16.gmra.mxu0 %v723
        %v2114 = vpop.f32.mrf.mxu0
        %v2115 = vadd.f32 %v2066, %v2114
        %v2116 = vpop.f32.mrf.mxu0
        %v2117 = vadd.f32 %v2068, %v2116
        %2118 = vmatmul.bf16.gmra.mxu0 %v726
        %v2119 = vpop.f32.mrf.mxu0
        %v2120 = vadd.f32 %v2071, %v2119
        %v2121 = vpop.f32.mrf.mxu0
        %v2122 = vadd.f32 %v2073, %v2121
        %2123 = vmatmul.bf16.gmra.mxu0 %v729
        %v2124 = vpop.f32.mrf.mxu0
        %v2125 = vadd.f32 %v2076, %v2124
        %v2126 = vpop.f32.mrf.mxu0
        %v2127 = vadd.f32 %v2078, %v2126
        %2128 = vdwg.mxu0
        %2129 = vmatpush.bf16.msra.mxu0 %v1347
        %2130 = vmatpush.bf16.msra.mxu0 %v1344
        %2131 = vmatpush.bf16.msra.mxu0 %v1341
        %2132 = vmatpush.bf16.msra.mxu0 %v1338
        %2133 = vmatpush.bf16.msra.mxu0 %v1335
        %2134 = vmatpush.bf16.msra.mxu0 %v1332
        %2135 = vmatpush.bf16.msra.mxu0 %v1329
        %2136 = vmatpush.bf16.msra.mxu0 %v1326
        %2137 = vmatmul.bf16.gmra.mxu0 %v747
        %v2138 = vpop.f32.mrf.mxu0
        %v2139 = vadd.f32 %v2090, %v2138
        %v2140 = vpop.f32.mrf.mxu0
        %v2141 = vadd.f32 %v2092, %v2140
        %2142 = vmatmul.bf16.gmra.mxu0 %v756
        %v2143 = vpop.f32.mrf.mxu0
        %v2144 = vadd.f32 %v2095, %v2143
        %v2145 = vpop.f32.mrf.mxu0
        %v2146 = vadd.f32 %v2097, %v2145
        %2147 = vmatmul.bf16.gmra.mxu0 %v765
        %v2148 = vpop.f32.mrf.mxu0
        %v2149 = vadd.f32 %v2100, %v2148
        %v2150 = vpop.f32.mrf.mxu0
        %v2151 = vadd.f32 %v2102, %v2150
        %2152 = vmatmul.bf16.gmra.mxu0 %v774
        %v2153 = vpop.f32.mrf.mxu0
        %v2154 = vadd.f32 %v2105, %v2153
        %v2155 = vpop.f32.mrf.mxu0
        %v2156 = vadd.f32 %v2107, %v2155
        %2157 = vmatmul.bf16.gmra.mxu0 %v783
        %v2158 = vpop.f32.mrf.mxu0
        %v2159 = vadd.f32 %v2110, %v2158
        %v2160 = vpop.f32.mrf.mxu0
        %v2161 = vadd.f32 %v2112, %v2160
        %2162 = vmatmul.bf16.gmra.mxu0 %v792
        %v2163 = vpop.f32.mrf.mxu0
        %v2164 = vadd.f32 %v2115, %v2163
        %v2165 = vpop.f32.mrf.mxu0
        %v2166 = vadd.f32 %v2117, %v2165
        %2167 = vmatmul.bf16.gmra.mxu0 %v801
        %v2168 = vpop.f32.mrf.mxu0
        %v2169 = vadd.f32 %v2120, %v2168
        %v2170 = vpop.f32.mrf.mxu0
        %v2171 = vadd.f32 %v2122, %v2170
        %2172 = vmatmul.bf16.gmra.mxu0 %v810
        %v2173 = vpop.f32.mrf.mxu0
        %v2174 = vadd.f32 %v2125, %v2173
        %v2175 = vpop.f32.mrf.mxu0
        %v2176 = vadd.f32 %v2127, %v2175
        %2177 = vdwg.mxu0
        %2178 = vmatpush.bf16.msra.mxu0 %v1371
        %2179 = vmatpush.bf16.msra.mxu0 %v1368
        %2180 = vmatpush.bf16.msra.mxu0 %v1365
        %2181 = vmatpush.bf16.msra.mxu0 %v1362
        %2182 = vmatpush.bf16.msra.mxu0 %v1359
        %2183 = vmatpush.bf16.msra.mxu0 %v1356
        %2184 = vmatpush.bf16.msra.mxu0 %v1353
        %2185 = vmatpush.bf16.msra.mxu0 %v1350
        %2186 = vmatmul.bf16.gmra.mxu0 %v822
        %v2187 = vpop.f32.mrf.mxu0
        %v2188 = vadd.f32 %v2139, %v2187
        %v2189 = vpop.f32.mrf.mxu0
        %v2190 = vadd.f32 %v2141, %v2189
        %2191 = vmatmul.bf16.gmra.mxu0 %v825
        %v2192 = vpop.f32.mrf.mxu0
        %v2193 = vadd.f32 %v2144, %v2192
        %v2194 = vpop.f32.mrf.mxu0
        %v2195 = vadd.f32 %v2146, %v2194
        %2196 = vmatmul.bf16.gmra.mxu0 %v828
        %v2197 = vpop.f32.mrf.mxu0
        %v2198 = vadd.f32 %v2149, %v2197
        %v2199 = vpop.f32.mrf.mxu0
        %v2200 = vadd.f32 %v2151, %v2199
        %2201 = vmatmul.bf16.gmra.mxu0 %v831
        %v2202 = vpop.f32.mrf.mxu0
        %v2203 = vadd.f32 %v2154, %v2202
        %v2204 = vpop.f32.mrf.mxu0
        %v2205 = vadd.f32 %v2156, %v2204
        %2206 = vmatmul.bf16.gmra.mxu0 %v834
        %v2207 = vpop.f32.mrf.mxu0
        %v2208 = vadd.f32 %v2159, %v2207
        %v2209 = vpop.f32.mrf.mxu0
        %v2210 = vadd.f32 %v2161, %v2209
        %2211 = vmatmul.bf16.gmra.mxu0 %v837
        %v2212 = vpop.f32.mrf.mxu0
        %v2213 = vadd.f32 %v2164, %v2212
        %v2214 = vpop.f32.mrf.mxu0
        %v2215 = vadd.f32 %v2166, %v2214
        %2216 = vmatmul.bf16.gmra.mxu0 %v840
        %v2217 = vpop.f32.mrf.mxu0
        %v2218 = vadd.f32 %v2169, %v2217
        %v2219 = vpop.f32.mrf.mxu0
        %v2220 = vadd.f32 %v2171, %v2219
        %2221 = vmatmul.bf16.gmra.mxu0 %v843
        %v2222 = vpop.f32.mrf.mxu0
        %v2223 = vadd.f32 %v2174, %v2222
        %v2224 = vpop.f32.mrf.mxu0
        %v2225 = vadd.f32 %v2176, %v2224
        %2226 = vdwg.mxu0
        %v2227 = vadd.f32 %v1698, %v522
        %v2228 = vadd.f32 %v1943, %v523
        %v2229 = vadd.f32 %v2188, %v524
        %v2230 = vadd.f32 %v1700, %v525
        %v2231 = vadd.f32 %v1945, %v526
        %v2232 = vadd.f32 %v2190, %v527
        %v2233 = vadd.f32 %v1703, %v522
        %v2234 = vadd.f32 %v1948, %v523
        %v2235 = vadd.f32 %v2193, %v524
        %v2236 = vadd.f32 %v1705, %v525
        %v2237 = vadd.f32 %v1950, %v526
        %v2238 = vadd.f32 %v2195, %v527
        %v2239 = vadd.f32 %v1708, %v522
        %v2240 = vadd.f32 %v1953, %v523
        %v2241 = vadd.f32 %v2198, %v524
        %v2242 = vadd.f32 %v1710, %v525
        %v2243 = vadd.f32 %v1955, %v526
        %v2244 = vadd.f32 %v2200, %v527
        %v2245 = vadd.f32 %v1713, %v522
        %v2246 = vadd.f32 %v1958, %v523
        %v2247 = vadd.f32 %v2203, %v524
        %v2248 = vadd.f32 %v1715, %v525
        %v2249 = vadd.f32 %v1960, %v526
        %v2250 = vadd.f32 %v2205, %v527
        %v2251 = vadd.f32 %v1718, %v522
        %v2252 = vadd.f32 %v1963, %v523
        %v2253 = vadd.f32 %v2208, %v524
        %v2254 = vadd.f32 %v1720, %v525
        %v2255 = vadd.f32 %v1965, %v526
        %v2256 = vadd.f32 %v2210, %v527
        %v2257 = vadd.f32 %v1723, %v522
        %v2258 = vadd.f32 %v1968, %v523
        %v2259 = vadd.f32 %v2213, %v524
        %v2260 = vadd.f32 %v1725, %v525
        %v2261 = vadd.f32 %v1970, %v526
        %v2262 = vadd.f32 %v2215, %v527
        %v2263 = vadd.f32 %v1728, %v522
        %v2264 = vadd.f32 %v1973, %v523
        %v2265 = vadd.f32 %v2218, %v524
        %v2266 = vadd.f32 %v1730, %v525
        %v2267 = vadd.f32 %v1975, %v526
        %v2268 = vadd.f32 %v2220, %v527
        %v2269 = vadd.f32 %v1733, %v522
        %v2270 = vadd.f32 %v1978, %v523
        %v2271 = vadd.f32 %v2223, %v524
        %v2272 = vadd.f32 %v1735, %v525
        %v2273 = vadd.f32 %v1980, %v526
        %v2274 = vadd.f32 %v2225, %v527
        %v2275 = vmax.f32 %v2227, %v2230
        %v2276 = vrot.slane %v2275, 4
        %v2277 = vmax.f32 %v2275, %v2276
        %v2278 = vrot.slane %v2277, 2
        %v2279 = vmax.f32 %v2277, %v2278
        %v2280 = vrot.slane %v2279, 1
        %v2281 = vmax.f32 %v2279, %v2280
        %v2282 = vmax.f32 %v2228, %v2231
        %v2283 = vrot.slane %v2282, 4
        %v2284 = vmax.f32 %v2282, %v2283
        %v2285 = vrot.slane %v2284, 2
        %v2286 = vmax.f32 %v2284, %v2285
        %v2287 = vrot.slane %v2286, 1
        %v2288 = vmax.f32 %v2286, %v2287
        %v2289 = vmax.f32 %v2229, %v2232
        %v2290 = vrot.slane %v2289, 4
        %v2291 = vmax.f32 %v2289, %v2290
        %v2292 = vrot.slane %v2291, 2
        %v2293 = vmax.f32 %v2291, %v2292
        %v2294 = vrot.slane %v2293, 1
        %v2295 = vmax.f32 %v2293, %v2294
        %v2296 = vmax.f32 %v2233, %v2236
        %v2297 = vrot.slane %v2296, 4
        %v2298 = vmax.f32 %v2296, %v2297
        %v2299 = vrot.slane %v2298, 2
        %v2300 = vmax.f32 %v2298, %v2299
        %v2301 = vrot.slane %v2300, 1
        %v2302 = vmax.f32 %v2300, %v2301
        %v2303 = vmax.f32 %v2234, %v2237
        %v2304 = vrot.slane %v2303, 4
        %v2305 = vmax.f32 %v2303, %v2304
        %v2306 = vrot.slane %v2305, 2
        %v2307 = vmax.f32 %v2305, %v2306
        %v2308 = vrot.slane %v2307, 1
        %v2309 = vmax.f32 %v2307, %v2308
        %v2310 = vmax.f32 %v2235, %v2238
        %v2311 = vrot.slane %v2310, 4
        %v2312 = vmax.f32 %v2310, %v2311
        %v2313 = vrot.slane %v2312, 2
        %v2314 = vmax.f32 %v2312, %v2313
        %v2315 = vrot.slane %v2314, 1
        %v2316 = vmax.f32 %v2314, %v2315
        %v2317 = vmax.f32 %v2239, %v2242
        %v2318 = vrot.slane %v2317, 4
        %v2319 = vmax.f32 %v2317, %v2318
        %v2320 = vrot.slane %v2319, 2
        %v2321 = vmax.f32 %v2319, %v2320
        %v2322 = vrot.slane %v2321, 1
        %v2323 = vmax.f32 %v2321, %v2322
        %v2324 = vmax.f32 %v2240, %v2243
        %v2325 = vrot.slane %v2324, 4
        %v2326 = vmax.f32 %v2324, %v2325
        %v2327 = vrot.slane %v2326, 2
        %v2328 = vmax.f32 %v2326, %v2327
        %v2329 = vrot.slane %v2328, 1
        %v2330 = vmax.f32 %v2328, %v2329
        %v2331 = vmax.f32 %v2241, %v2244
        %v2332 = vrot.slane %v2331, 4
        %v2333 = vmax.f32 %v2331, %v2332
        %v2334 = vrot.slane %v2333, 2
        %v2335 = vmax.f32 %v2333, %v2334
        %v2336 = vrot.slane %v2335, 1
        %v2337 = vmax.f32 %v2335, %v2336
        %v2338 = vmax.f32 %v2245, %v2248
        %v2339 = vrot.slane %v2338, 4
        %v2340 = vmax.f32 %v2338, %v2339
        %v2341 = vrot.slane %v2340, 2
        %v2342 = vmax.f32 %v2340, %v2341
        %v2343 = vrot.slane %v2342, 1
        %v2344 = vmax.f32 %v2342, %v2343
        %v2345 = vmax.f32 %v2246, %v2249
        %v2346 = vrot.slane %v2345, 4
        %v2347 = vmax.f32 %v2345, %v2346
        %v2348 = vrot.slane %v2347, 2
        %v2349 = vmax.f32 %v2347, %v2348
        %v2350 = vrot.slane %v2349, 1
        %v2351 = vmax.f32 %v2349, %v2350
        %v2352 = vmax.f32 %v2247, %v2250
        %v2353 = vrot.slane %v2352, 4
        %v2354 = vmax.f32 %v2352, %v2353
        %v2355 = vrot.slane %v2354, 2
        %v2356 = vmax.f32 %v2354, %v2355
        %v2357 = vrot.slane %v2356, 1
        %v2358 = vmax.f32 %v2356, %v2357
        %v2359 = vmax.f32 %v2251, %v2254
        %v2360 = vrot.slane %v2359, 4
        %v2361 = vmax.f32 %v2359, %v2360
        %v2362 = vrot.slane %v2361, 2
        %v2363 = vmax.f32 %v2361, %v2362
        %v2364 = vrot.slane %v2363, 1
        %v2365 = vmax.f32 %v2363, %v2364
        %v2366 = vmax.f32 %v2252, %v2255
        %v2367 = vrot.slane %v2366, 4
        %v2368 = vmax.f32 %v2366, %v2367
        %v2369 = vrot.slane %v2368, 2
        %v2370 = vmax.f32 %v2368, %v2369
        %v2371 = vrot.slane %v2370, 1
        %v2372 = vmax.f32 %v2370, %v2371
        %v2373 = vmax.f32 %v2253, %v2256
        %v2374 = vrot.slane %v2373, 4
        %v2375 = vmax.f32 %v2373, %v2374
        %v2376 = vrot.slane %v2375, 2
        %v2377 = vmax.f32 %v2375, %v2376
        %v2378 = vrot.slane %v2377, 1
        %v2379 = vmax.f32 %v2377, %v2378
        %v2380 = vmax.f32 %v2257, %v2260
        %v2381 = vrot.slane %v2380, 4
        %v2382 = vmax.f32 %v2380, %v2381
        %v2383 = vrot.slane %v2382, 2
        %v2384 = vmax.f32 %v2382, %v2383
        %v2385 = vrot.slane %v2384, 1
        %v2386 = vmax.f32 %v2384, %v2385
        %v2387 = vmax.f32 %v2258, %v2261
        %v2388 = vrot.slane %v2387, 4
        %v2389 = vmax.f32 %v2387, %v2388
        %v2390 = vrot.slane %v2389, 2
        %v2391 = vmax.f32 %v2389, %v2390
        %v2392 = vrot.slane %v2391, 1
        %v2393 = vmax.f32 %v2391, %v2392
        %v2394 = vmax.f32 %v2259, %v2262
        %v2395 = vrot.slane %v2394, 4
        %v2396 = vmax.f32 %v2394, %v2395
        %v2397 = vrot.slane %v2396, 2
        %v2398 = vmax.f32 %v2396, %v2397
        %v2399 = vrot.slane %v2398, 1
        %v2400 = vmax.f32 %v2398, %v2399
        %v2401 = vmax.f32 %v2263, %v2266
        %v2402 = vrot.slane %v2401, 4
        %v2403 = vmax.f32 %v2401, %v2402
        %v2404 = vrot.slane %v2403, 2
        %v2405 = vmax.f32 %v2403, %v2404
        %v2406 = vrot.slane %v2405, 1
        %v2407 = vmax.f32 %v2405, %v2406
        %v2408 = vmax.f32 %v2264, %v2267
        %v2409 = vrot.slane %v2408, 4
        %v2410 = vmax.f32 %v2408, %v2409
        %v2411 = vrot.slane %v2410, 2
        %v2412 = vmax.f32 %v2410, %v2411
        %v2413 = vrot.slane %v2412, 1
        %v2414 = vmax.f32 %v2412, %v2413
        %v2415 = vmax.f32 %v2265, %v2268
        %v2416 = vrot.slane %v2415, 4
        %v2417 = vmax.f32 %v2415, %v2416
        %v2418 = vrot.slane %v2417, 2
        %v2419 = vmax.f32 %v2417, %v2418
        %v2420 = vrot.slane %v2419, 1
        %v2421 = vmax.f32 %v2419, %v2420
        %v2422 = vmax.f32 %v2269, %v2272
        %v2423 = vrot.slane %v2422, 4
        %v2424 = vmax.f32 %v2422, %v2423
        %v2425 = vrot.slane %v2424, 2
        %v2426 = vmax.f32 %v2424, %v2425
        %v2427 = vrot.slane %v2426, 1
        %v2428 = vmax.f32 %v2426, %v2427
        %v2429 = vmax.f32 %v2270, %v2273
        %v2430 = vrot.slane %v2429, 4
        %v2431 = vmax.f32 %v2429, %v2430
        %v2432 = vrot.slane %v2431, 2
        %v2433 = vmax.f32 %v2431, %v2432
        %v2434 = vrot.slane %v2433, 1
        %v2435 = vmax.f32 %v2433, %v2434
        %v2436 = vmax.f32 %v2271, %v2274
        %v2437 = vrot.slane %v2436, 4
        %v2438 = vmax.f32 %v2436, %v2437
        %v2439 = vrot.slane %v2438, 2
        %v2440 = vmax.f32 %v2438, %v2439
        %v2441 = vrot.slane %v2440, 1
        %v2442 = vmax.f32 %v2440, %v2441
        %v2443 = vld [vmem:[#allocation7] sm:$0x7]
        %v2445 = vperm.slane %v2443, 0
        %v2446 = vperm.slane %v2443, 1
        %v2447 = vperm.slane %v2443, 2
        %v2451 = vadd.f32 %v2281, %v2445
        %v2452 = vadd.f32 %v2288, %v2446
        %v2453 = vadd.f32 %v2295, %v2447
        %v2454 = vadd.f32 %v2302, %v2445
        %v2455 = vadd.f32 %v2309, %v2446
        %v2456 = vadd.f32 %v2316, %v2447
        %v2457 = vadd.f32 %v2323, %v2445
        %v2458 = vadd.f32 %v2330, %v2446
        %v2459 = vadd.f32 %v2337, %v2447
        %v2460 = vadd.f32 %v2344, %v2445
        %v2461 = vadd.f32 %v2351, %v2446
        %v2462 = vadd.f32 %v2358, %v2447
        %v2463 = vadd.f32 %v2365, %v2445
        %v2464 = vadd.f32 %v2372, %v2446
        %v2465 = vadd.f32 %v2379, %v2447
        %v2466 = vadd.f32 %v2386, %v2445
        %v2467 = vadd.f32 %v2393, %v2446
        %v2468 = vadd.f32 %v2400, %v2447
        %v2469 = vadd.f32 %v2407, %v2445
        %v2470 = vadd.f32 %v2414, %v2446
        %v2471 = vadd.f32 %v2421, %v2447
        %v2472 = vadd.f32 %v2428, %v2445
        %v2473 = vadd.f32 %v2435, %v2446
        %v2474 = vadd.f32 %v2442, %v2447
        %v2475 = vmax.f32 %v2451, 0.0
        %v2476 = vmax.f32 %v2452, 0.0
        %v2477 = vmax.f32 %v2453, 0.0
        %v2478 = vmax.f32 %v2454, 0.0
        %v2479 = vmax.f32 %v2455, 0.0
        %v2480 = vmax.f32 %v2456, 0.0
        %v2481 = vmax.f32 %v2457, 0.0
        %v2482 = vmax.f32 %v2458, 0.0
        %v2483 = vmax.f32 %v2459, 0.0
        %v2484 = vmax.f32 %v2460, 0.0
        %v2485 = vmax.f32 %v2461, 0.0
        %v2486 = vmax.f32 %v2462, 0.0
        %v2487 = vmax.f32 %v2463, 0.0
        %v2488 = vmax.f32 %v2464, 0.0
        %v2489 = vmax.f32 %v2465, 0.0
        %v2490 = vmax.f32 %v2466, 0.0
        %v2491 = vmax.f32 %v2467, 0.0
        %v2492 = vmax.f32 %v2468, 0.0
        %v2493 = vmax.f32 %v2469, 0.0
        %v2494 = vmax.f32 %v2470, 0.0
        %v2495 = vmax.f32 %v2471, 0.0
        %v2496 = vmax.f32 %v2472, 0.0
        %v2497 = vmax.f32 %v2473, 0.0
        %v2498 = vmax.f32 %v2474, 0.0
        %v2499 = vld [vmem:[#allocation10] sm:$0xff]
        %v2500 = vld [vmem:[#allocation10 + $0x8] sm:$0xff]
        %v2501 = vld [vmem:[#allocation10 + $0x10] sm:$0xff]
        %v2502 = vld [vmem:[#allocation10 + $0x18] sm:$0xff]
        %v2503 = vld [vmem:[#allocation10 + $0x20] sm:$0xff]
        %v2504 = vld [vmem:[#allocation10 + $0x28] sm:$0xff]
        %v2505 = vld [vmem:[#allocation10 + $0x30] sm:$0xff]
        %v2506 = vld [vmem:[#allocation10 + $0x38] sm:$0xff]
        %v2507 = vld [vmem:[#allocation10 + $0x40] sm:$0xff]
        %v2508 = vld [vmem:[#allocation10 + $0x48] sm:$0xff]
        %v2509 = vld [vmem:[#allocation10 + $0x50] sm:$0xff]
        %v2510 = vld [vmem:[#allocation10 + $0x58] sm:$0xff]
        %v2511 = vld [vmem:[#allocation10 + $0x60] sm:$0xff]
        %v2512 = vld [vmem:[#allocation10 + $0x68] sm:$0xff]
        %v2513 = vld [vmem:[#allocation10 + $0x70] sm:$0xff]
        %v2514 = vld [vmem:[#allocation10 + $0x78] sm:$0xff]
        %v2515 = vld [vmem:[#allocation10 + $0x80] sm:$0xff]
        %v2516 = vld [vmem:[#allocation10 + $0x88] sm:$0xff]
        %v2517 = vld [vmem:[#allocation10 + $0x90] sm:$0xff]
        %v2518 = vld [vmem:[#allocation10 + $0x98] sm:$0xff]
        %v2519 = vld [vmem:[#allocation10 + $0xa0] sm:$0xff]
        %v2520 = vld [vmem:[#allocation10 + $0xa8] sm:$0xff]
        %v2521 = vld [vmem:[#allocation10 + $0xb0] sm:$0xff]
        %v2522 = vld [vmem:[#allocation10 + $0xb8] sm:$0xff]
        %v2523 = vld [vmem:[#allocation10 + $0xc0] sm:$0xff]
        %v2524 = vld [vmem:[#allocation10 + $0xc8] sm:$0xff]
        %v2525 = vld [vmem:[#allocation10 + $0xd0] sm:$0xff]
        %v2526 = vld [vmem:[#allocation10 + $0xd8] sm:$0xff]
        %v2527 = vld [vmem:[#allocation10 + $0xe0] sm:$0xff]
        %v2528 = vld [vmem:[#allocation10 + $0xe8] sm:$0xff]
        %v2529 = vld [vmem:[#allocation10 + $0xf0] sm:$0xff]
        %v2530 = vld [vmem:[#allocation10 + $0xf8] sm:$0xff]
        %v2531 = vld [vmem:[#allocation10 + $0x100] sm:$0xff]
        %v2532 = vld [vmem:[#allocation10 + $0x108] sm:$0xff]
        %v2533 = vld [vmem:[#allocation10 + $0x110] sm:$0xff]
        %v2534 = vld [vmem:[#allocation10 + $0x118] sm:$0xff]
        %v2535 = vld [vmem:[#allocation10 + $0x120] sm:$0xff]
        %v2536 = vld [vmem:[#allocation10 + $0x128] sm:$0xff]
        %v2537 = vld [vmem:[#allocation10 + $0x130] sm:$0xff]
        %v2538 = vld [vmem:[#allocation10 + $0x138] sm:$0xff]
        %v2539 = vld [vmem:[#allocation10 + $0x140] sm:$0xff]
        %v2540 = vld [vmem:[#allocation10 + $0x148] sm:$0xff]
        %v2541 = vld [vmem:[#allocation10 + $0x150] sm:$0xff]
        %v2542 = vld [vmem:[#allocation10 + $0x158] sm:$0xff]
        %v2543 = vld [vmem:[#allocation10 + $0x160] sm:$0xff]
        %v2544 = vld [vmem:[#allocation10 + $0x168] sm:$0xff]
        %v2545 = vld [vmem:[#allocation10 + $0x170] sm:$0xff]
        %v2546 = vld [vmem:[#allocation10 + $0x178] sm:$0xff]
        %v2547 = vld [vmem:[%s5] sm:$0x1]
        %v2549 = vperm.slane %v2547, 0
        %v2575 = vrot.slane %v2478, 7
        %vm2576 = vcmask 1041409
        %v2577 = vsel %vm2576, %v2575, %v2475
        %v2578 = vrot.slane %v2481, 6
        %vm2579 = vcmask 1042434
        %v2580 = vsel %vm2579, %v2578, %v2577
        %v2581 = vrot.slane %v2484, 5
        %vm2582 = vcmask 1043459
        %v2583 = vsel %vm2582, %v2581, %v2580
        %v2584 = vrot.slane %v2487, 4
        %vm2585 = vcmask 1044484
        %v2586 = vsel %vm2585, %v2584, %v2583
        %v2587 = vrot.slane %v2490, 3
        %vm2588 = vcmask 1045509
        %v2589 = vsel %vm2588, %v2587, %v2586
        %v2590 = vrot.slane %v2493, 2
        %vm2591 = vcmask 1046534
        %v2592 = vsel %vm2591, %v2590, %v2589
        %v2593 = vrot.slane %v2496, 1
        %vm2594 = vcmask 1047559
        %v2595 = vsel %vm2594, %v2593, %v2592
        %v2596 = vrot.slane %v2479, 7
        %v2597 = vsel %vm2576, %v2596, %v2476
        %v2598 = vrot.slane %v2482, 6
        %v2599 = vsel %vm2579, %v2598, %v2597
        %v2600 = vrot.slane %v2485, 5
        %v2601 = vsel %vm2582, %v2600, %v2599
        %v2602 = vrot.slane %v2488, 4
        %v2603 = vsel %vm2585, %v2602, %v2601
        %v2604 = vrot.slane %v2491, 3
        %v2605 = vsel %vm2588, %v2604, %v2603
        %v2606 = vrot.slane %v2494, 2
        %v2607 = vsel %vm2591, %v2606, %v2605
        %v2608 = vrot.slane %v2497, 1
        %v2609 = vsel %vm2594, %v2608, %v2607
        %v2610 = vrot.slane %v2480, 7
        %v2611 = vsel %vm2576, %v2610, %v2477
        %v2612 = vrot.slane %v2483, 6
        %v2613 = vsel %vm2579, %v2612, %v2611
        %v2614 = vrot.slane %v2486, 5
        %v2615 = vsel %vm2582, %v2614, %v2613
        %v2616 = vrot.slane %v2489, 4
        %v2617 = vsel %vm2585, %v2616, %v2615
        %v2618 = vrot.slane %v2492, 3
        %v2619 = vsel %vm2588, %v2618, %v2617
        %v2620 = vrot.slane %v2495, 2
        %v2621 = vsel %vm2591, %v2620, %v2619
        %v2622 = vrot.slane %v2498, 1
        %v2623 = vsel %vm2594, %v2622, %v2621
        %2627 = vmatpush.msra.mxu0 %v2514
        %2628 = vmatpush.msra.mxu0 %v2513
        %2629 = vmatpush.msra.mxu0 %v2512
        %2630 = vmatpush.msra.mxu0 %v2511
        %2631 = vmatpush.msra.mxu0 %v2510
        %2632 = vmatpush.msra.mxu0 %v2509
        %2633 = vmatpush.msra.mxu0 %v2508
        %2634 = vmatpush.msra.mxu0 %v2507
        %2635 = vmatpush.msra.mxu0 %v2506
        %2636 = vmatpush.msra.mxu0 %v2505
        %2637 = vmatpush.msra.mxu0 %v2504
        %2638 = vmatpush.msra.mxu0 %v2503
        %2639 = vmatpush.msra.mxu0 %v2502
        %2640 = vmatpush.msra.mxu0 %v2501
        %2641 = vmatpush.msra.mxu0 %v2500
        %2642 = vmatpush.msra.mxu0 %v2499
        %2643 = vmatmul.f32.gmra.mxu0 %v2595
        %v2644 = vpop.f32.mrf.mxu0
        %v2645 = vadd.f32 %v2549, %v2644
        %2646 = vdwg.mxu0
        %2647 = vmatpush.msra.mxu0 %v2530
        %2648 = vmatpush.msra.mxu0 %v2529
        %2649 = vmatpush.msra.mxu0 %v2528
        %2650 = vmatpush.msra.mxu0 %v2527
        %2651 = vmatpush.msra.mxu0 %v2526
        %2652 = vmatpush.msra.mxu0 %v2525
        %2653 = vmatpush.msra.mxu0 %v2524
        %2654 = vmatpush.msra.mxu0 %v2523
        %2655 = vmatpush.msra.mxu0 %v2522
        %2656 = vmatpush.msra.mxu0 %v2521
        %2657 = vmatpush.msra.mxu0 %v2520
        %2658 = vmatpush.msra.mxu0 %v2519
        %2659 = vmatpush.msra.mxu0 %v2518
        %2660 = vmatpush.msra.mxu0 %v2517
        %2661 = vmatpush.msra.mxu0 %v2516
        %2662 = vmatpush.msra.mxu0 %v2515
        %2663 = vmatmul.f32.gmra.mxu0 %v2609
        %v2664 = vpop.f32.mrf.mxu0
        %v2665 = vadd.f32 %v2645, %v2664
        %2666 = vdwg.mxu0
        %2667 = vmatpush.msra.mxu0 %v2546
        %2668 = vmatpush.msra.mxu0 %v2545
        %2669 = vmatpush.msra.mxu0 %v2544
        %2670 = vmatpush.msra.mxu0 %v2543
        %2671 = vmatpush.msra.mxu0 %v2542
        %2672 = vmatpush.msra.mxu0 %v2541
        %2673 = vmatpush.msra.mxu0 %v2540
        %2674 = vmatpush.msra.mxu0 %v2539
        %2675 = vmatpush.msra.mxu0 %v2538
        %2676 = vmatpush.msra.mxu0 %v2537
        %2677 = vmatpush.msra.mxu0 %v2536
        %2678 = vmatpush.msra.mxu0 %v2535
        %2679 = vmatpush.msra.mxu0 %v2534
        %2680 = vmatpush.msra.mxu0 %v2533
        %2681 = vmatpush.msra.mxu0 %v2532
        %2682 = vmatpush.msra.mxu0 %v2531
        %2683 = vmatmul.f32.gmra.mxu0 %v2623
        %v2684 = vpop.f32.mrf.mxu0
        %v2685 = vadd.f32 %v2665, %v2684
        %2686 = vdwg.mxu0
        %2687 = vst [vmem:[%s336] sm:$0xff] %v2685
        %s2688 = sand.u32 %s164, 1
        %s2689 = scalar_lea.sflag [#allocation4], %s2688
        %s2690 = sand.u32 %s164, 1
        %s2691 = smul.addr %s2690, 8
        %s2692 = scalar_lea.vmem [#allocation11], %s2691
        // Predicated region
        $region65: #{tpu_custom_call.1} parent=43 // pred_check
          %p2693 = pneg %p174
        $region66: #{tpu_custom_call.1} parent=43 // pred_check_branch
          %2695 = sbr.rel (%p2693) target = $region68
        $region67: #{tpu_custom_call.1} parent=43 // pred_region
          %2697 = vsyncadd %s2689, 0
          %s2698 = smul.addr %s25, 8
          %s2699 = scalar_lea.hbm %s6, %s2698
          %s2701 = sshll.u32 %s2692, 4
          %s2702 = int_to_ptr.vmem [resolvable:$true] %s2701
          %s2703 = sshll.u32 %s2699, 4
          %s2704 = int_to_ptr.hbm [resolvable:$true] %s2703
          %2706 = dma.vmem_to_hbm [thread:$0]  %s2702, 128, %s2704, %s2689
        $region68: #{tpu_custom_call.1} parent=43 // pred_fallthru
          _
      $region44: #{tpu_custom_call.1} parent=5 // pred_fallthru
        _
      %p2707 = scmp.le.s32.totalorder 2, %s20
      // Predicated region
      $region69: #{tpu_custom_call.1} parent=5 // pred_check
        %p2708 = pneg %p2707
      $region70: #{tpu_custom_call.1} parent=5 // pred_check_branch
        %2710 = sbr.rel (%p2708) target = $region72
      $region71: #{tpu_custom_call.1} parent=5 // pred_region
        %s2711 = ssub.s32 %s20, 2
        // Predicated region
        $region73: #{tpu_custom_call.1} parent=71 // pred_check
          %p2712 = pneg %p180
        $region74: #{tpu_custom_call.1} parent=71 // pred_check_branch
          %2714 = sbr.rel (%p2712) target = $region76
        $region75: #{tpu_custom_call.1} parent=71 // pred_region
          %s2715 = sand.u32 %s165, 1
          %s2716 = scalar_lea.sflag [#allocation4], %s2715
          %s2717 = sand.u32 %s165, 1
          %s2718 = smul.addr %s2717, 8
          %s2719 = scalar_lea.vmem [#allocation11], %s2718
          %2721 = dma.done %s2716, 128
        $region76: #{tpu_custom_call.1} parent=71 // pred_fallthru
          _
      $region72: #{tpu_custom_call.1} parent=5 // pred_fallthru
        _
    $region6: #{tpu_custom_call.1} parent=1 // loop_footer
      %s24 = sadd.s32 1, %s20
    $region7: #{tpu_custom_call.1} parent=1 // loop_footer_branch
      %19 = sbr.rel target = $region3
    $region8: #{tpu_custom_call.1} parent=1 // loop_exit
      _
    %2722 = vsyncpa [#allocation3], 1
    %s2723 = scalar_lea.sflag [#allocation3], 1
    %2724 = vsyncpa %s2723, 1
    %2725 = vsyncpa [#allocation6], 1
    %2726 = vsyncpa [#allocation9], 1
    %2727 = vsyncpa [#allocation4], 1
    %s2728 = scalar_lea.sflag [#allocation4], 1
    %2729 = vsyncpa %s2728, 1

</llo_original>
